<compile_context>
chip_gen: v5e
topology: v5e:2x2
jax: 0.10.0
libtpu: 0.0.40
codegen_flags: <defaults>
</compile_context>

<pallas_src>
import jax
import jax.numpy as jnp
from jax.experimental import pallas as pl
from jax.experimental.pallas import tpu as pltpu

_LANES = 128


def _round_up(x, m):
    return ((x + m - 1) // m) * m


def _exact_gelu(x):
    # nn.GELU() default: exact erf formulation.
    return 0.5 * x * (1.0 + jax.lax.erf(x * jnp.float32(0.7071067811865476)))


def _classifier_head_kernel(x_ref, mask_ref, w1_ref, b1_ref, w2_ref, b2_ref, o_ref):
    # x_ref:    (tm, D)   bf16  (pipelined row tile)
    # mask_ref: (tm, 1)   f32   (pipelined row tile)
    # w1_ref:   (D, H)    bf16  (resident across the grid)
    # b1_ref:   (1, H)    f32   (resident)
    # w2_ref:   (H, 1)    f32   (resident out_proj column, num_classes == 1)
    # b2_ref:   (1, 1)    f32   SMEM scalar
    # o_ref:    (tm, 1)   f32

    # First linear on the MXU (bf16 operands, f32 accumulation).
    h = jnp.dot(x_ref[...], w1_ref[...], preferred_element_type=jnp.float32)  # (tm, H)
    h = _exact_gelu(h + b1_ref[...])

    # out_proj on the MXU: (tm, H) @ (H, 1) -> (tm, 1); stays sublane-major.
    logits = jnp.dot(h, w2_ref[...], preferred_element_type=jnp.float32)
    out = (logits + b2_ref[0, 0]) * mask_ref[...]
    out = jnp.where(out == 0.0, jnp.float32(-0.009), out)
    o_ref[...] = jax.nn.sigmoid(out)


def _vmem_capacity_bytes():
    try:
        return int(pltpu.get_tpu_info().vmem_capacity_bytes)
    except Exception:
        return 64 * 1024 * 1024  # assume v7x worst case (64 MiB / TensorCore)


def _vmem_bytes(tm, D, H, x_bytes):
    """Conservative VMEM footprint estimate for one pipelined configuration."""
    lanes_h = _round_up(H, _LANES)
    # Double-buffered pipelined tiles: x (bf16), mask & out ((tm,1) pads to 128 lanes).
    tiles = 2 * tm * D * x_bytes + 2 * 2 * tm * _LANES * 4
    # "Resident" operands are still double-buffered by the BlockSpec pipeline.
    weights = 2 * (_round_up(D, 16) * lanes_h * x_bytes     # W1
                   + 8 * lanes_h * 4                        # b1 (sublane-padded)
                   + _round_up(H, 8) * _LANES * 4)          # W2 column (lane-padded)
    # Compiler-managed f32 intermediates along the (tm, H) GELU chain (+ slack).
    interm = 2 * tm * lanes_h * 4
    return tiles + weights + interm


def _pick_tile(M, D, H, x_bytes, budget):
    m_cap = _round_up(max(M, 1), 256)
    cands = [t for t in (4096, 2048, 1024, 512, 256) if t <= m_cap] or [256]
    fitting = [t for t in cands if _vmem_bytes(t, D, H, x_bytes) <= budget] or [cands[-1]]
    # Minimize padded rows (wasted matmul work) first, then prefer the largest
    # tile (fewer grid steps, bigger DMAs).
    tm = min(fitting, key=lambda t: (pl.cdiv(M, t) * t, -t))
    return tm, _vmem_bytes(tm, D, H, x_bytes)


@jax.jit
def exab_classifier_head(hidden_states, mask, w1, b1, w2, b2):
    """hidden_states: [B, S, D], mask: [B, S] (bool/int/float) -> [B, S] f32."""
    B, S, D = hidden_states.shape
    H = w1.shape[1]
    assert w2.shape == (H, 1), "squeeze(-1) in the reference implies num_classes == 1"

    compute_dtype = jnp.bfloat16
    x_bytes = jnp.dtype(compute_dtype).itemsize

    M = B * S
    phys = _vmem_capacity_bytes()
    budget = int(phys * 0.70)                       # headroom for compiler temps
    tm, need = _pick_tile(M, D, H, x_bytes, budget)
    G = pl.cdiv(M, tm)
    M_pad = G * tm

    # Flatten rows, cast the dominant streams to bf16, pad to the row tile.
    # Padded rows have mask 0 -> they hit the -0.009 branch and are sliced off.
    x2d = hidden_states.reshape(M, D).astype(compute_dtype)
    mask2d = mask.reshape(M, 1).astype(jnp.float32)
    if M_pad != M:
        x2d = jnp.pad(x2d, ((0, M_pad - M), (0, 0)))
        mask2d = jnp.pad(mask2d, ((0, M_pad - M), (0, 0)))

    w1c = w1.astype(compute_dtype)
    b1_2d = b1.reshape(1, H).astype(jnp.float32)
    w2_col = w2.reshape(H, 1).astype(jnp.float32)
    b2_sc = b2.reshape(1, 1).astype(jnp.float32)

    # Scoped VMEM limit: enough for this config (with slack), below physical.
    vmem_limit = int(min(max(need * 5 // 4, 32 * 1024 * 1024), int(phys * 0.85)))

    cost = pl.CostEstimate(
        flops=2 * M_pad * D * H + 2 * M_pad * H + 6 * M_pad,
        transcendentals=M_pad * H + M_pad,          # erf in GELU + sigmoid
        bytes_accessed=(M_pad * D * x_bytes + M_pad * 4 + M_pad * 4
                        + D * H * x_bytes + (2 * H + H + 1) * 4),
    )

    grid_spec = pltpu.PrefetchScalarGridSpec(
        num_scalar_prefetch=0,
        grid=(G,),
        in_specs=[
            pl.BlockSpec((tm, D), lambda i: (i, 0)),            # x tile (pipelined)
            pl.BlockSpec((tm, 1), lambda i: (i, 0)),            # mask tile
            pl.BlockSpec((D, H), lambda i: (0, 0)),             # W1 resident
            pl.BlockSpec((1, H), lambda i: (0, 0)),             # b1 resident
            pl.BlockSpec((H, 1), lambda i: (0, 0)),             # W2 column resident
            pl.BlockSpec(memory_space=pltpu.MemorySpace.SMEM),  # b2 scalar
        ],
        out_specs=pl.BlockSpec((tm, 1), lambda i: (i, 0)),
    )

    out2d = pl.pallas_call(
        _classifier_head_kernel,
        out_shape=jax.ShapeDtypeStruct((M_pad, 1), jnp.float32),
        grid_spec=grid_spec,
        compiler_params=pltpu.CompilerParams(
            dimension_semantics=("parallel",),
            vmem_limit_bytes=vmem_limit,
        ),
        cost_estimate=cost,
    )(x2d, mask2d, w1c, b1_2d, w2_col, b2_sc)

    return out2d.reshape(M_pad)[:M].reshape(B, S)


def _reference(hidden_states, mask, w1, b1, w2, b2):
    h = hidden_states.astype(jnp.float32) @ w1 + b1
    h = 0.5 * h * (1.0 + jax.lax.erf(h / jnp.sqrt(2.0)))
    out = (h @ w2 + b2)[..., 0]
    out = out * mask.astype(jnp.float32)
    out = jnp.where(out == 0.0, -0.009, out)
    return jax.nn.sigmoid(out)


if __name__ == "__main__":
    # Small shapes consistent with the module's forward.
    input_dim, inner_dim, num_classes = 32, 16, 1
    B, S = 2, 8

    key = jax.random.PRNGKey(0)
    k_x, k_m, k_w1, k_b1, k_w2, k_b2 = jax.random.split(key, 6)

    hidden_states = jax.random.normal(k_x, (B, S, input_dim), dtype=jnp.float32)
    # Boolean mask with some zeros so the `out == 0 -> -0.009` branch is exercised.
    mask = jax.random.uniform(k_m, (B, S)) > 0.3

    w1 = jax.random.normal(k_w1, (input_dim, inner_dim), dtype=jnp.float32) * 0.1
    b1 = jax.random.normal(k_b1, (inner_dim,), dtype=jnp.float32) * 0.1
    w2 = jax.random.normal(k_w2, (inner_dim, num_classes), dtype=jnp.float32) * 0.1
    b2 = jax.random.normal(k_b2, (num_classes,), dtype=jnp.float32) * 0.1

    out = jax.block_until_ready(exab_classifier_head(hidden_states, mask, w1, b1, w2, b2))
    ref = _reference(hidden_states, mask, w1, b1, w2, b2)
    assert out.shape == (B, S)
    # bf16 x/W1 inside the kernel vs. the f32 reference -> loosened tolerance.
    assert jnp.allclose(out, ref, atol=5e-3, rtol=5e-3), (out, ref)

    # Slightly larger check that exercises the multi-step grid + padding path.
    B2, S2, D2, H2 = 2, 1280, 64, 48
    k2 = jax.random.split(jax.random.PRNGKey(1), 6)
    hs2 = jax.random.normal(k2[0], (B2, S2, D2), dtype=jnp.float32)
    m2 = jax.random.uniform(k2[1], (B2, S2)) > 0.5
    w1b = jax.random.normal(k2[2], (D2, H2), dtype=jnp.float32) * 0.05
    b1b = jax.random.normal(k2[3], (H2,), dtype=jnp.float32) * 0.05
    w2b = jax.random.normal(k2[4], (H2, 1), dtype=jnp.float32) * 0.05
    b2b = jax.random.normal(k2[5], (1,), dtype=jnp.float32) * 0.05
    out2 = jax.block_until_ready(exab_classifier_head(hs2, m2, w1b, b1b, w2b, b2b))
    ref2 = _reference(hs2, m2, w1b, b1b, w2b, b2b)
    assert out2.shape == (B2, S2)
    assert jnp.allclose(out2, ref2, atol=5e-3, rtol=5e-3)

    print("KERNEL_OK")
</pallas_src>

<mosaic_0001>
module attributes {stable_mosaic.version = 11 : i64} {
  func.func @_classifier_head_kernel(%arg0: i32, %arg1: memref<256x32xbf16, #tpu.memory_space<vmem>>, %arg2: memref<256x1xf32, #tpu.memory_space<vmem>>, %arg3: memref<32x16xbf16, #tpu.memory_space<vmem>>, %arg4: memref<1x16xf32, #tpu.memory_space<vmem>>, %arg5: memref<16x1xf32, #tpu.memory_space<vmem>>, %arg6: memref<1x1xf32, #tpu.memory_space<smem>>, %arg7: memref<256x1xf32, #tpu.memory_space<vmem>>) attributes {dimension_semantics = [#tpu.dimension_semantics<parallel>], iteration_bounds = array<i64: 1>, scalar_prefetch = 0 : i64, scratch_operands = 0 : i64, tpu.core_type = #tpu.core_type<tc>, window_params = [{transform_indices = @transform_0, window_bounds = array<i64: 256, 32>}, {transform_indices = @transform_1, window_bounds = array<i64: 256, 1>}, {pipeline_mode = #tpu.pipeline_mode<synchronous>, transform_indices = @transform_2, window_bounds = array<i64: 32, 16>}, {pipeline_mode = #tpu.pipeline_mode<synchronous>, transform_indices = @transform_3, window_bounds = array<i64: 1, 16>}, {pipeline_mode = #tpu.pipeline_mode<synchronous>, transform_indices = @transform_4, window_bounds = array<i64: 16, 1>}, {transform_indices = @transform_5, window_bounds = array<i64: 1, 1>}, {transform_indices = @transform_6, window_bounds = array<i64: 256, 1>}]} {
    %c0 = arith.constant 0 : index
    %c0_0 = arith.constant 0 : index
    %0 = vector.load %arg1[%c0, %c0_0] : memref<256x32xbf16, #tpu.memory_space<vmem>>, vector<256x32xbf16>
    %c0_1 = arith.constant 0 : index
    %c0_2 = arith.constant 0 : index
    %1 = vector.load %arg3[%c0_1, %c0_2] : memref<32x16xbf16, #tpu.memory_space<vmem>>, vector<32x16xbf16>
    %cst = arith.constant dense<0.000000e+00> : vector<256x16xf32>
    %2 = tpu.matmul %0, %1, %cst {dimension_numbers = #tpu.dot_dimension_numbers<[1], [0], [0], [1], [0, 0, 1, 1], [], []>} : vector<256x32xbf16>, vector<32x16xbf16>, vector<256x16xf32> -> vector<256x16xf32>
    %c0_3 = arith.constant 0 : index
    %c0_4 = arith.constant 0 : index
    %3 = vector.load %arg4[%c0_3, %c0_4] : memref<1x16xf32, #tpu.memory_space<vmem>>, vector<1x16xf32>
    %4 = vector.broadcast %3 : vector<1x16xf32> to vector<256x16xf32>
    %5 = arith.addf %2, %4 : vector<256x16xf32>
    %cst_5 = arith.constant 5.000000e-01 : f32
    %6 = vector.broadcast %cst_5 : f32 to vector<256x16xf32>
    %7 = arith.mulf %6, %5 : vector<256x16xf32>
    %cst_6 = arith.constant 0.707106769 : f32
    %8 = vector.broadcast %cst_6 : f32 to vector<256x16xf32>
    %9 = arith.mulf %5, %8 : vector<256x16xf32>
    %10 = math.erf %9 : vector<256x16xf32>
    %cst_7 = arith.constant 1.000000e+00 : f32
    %11 = vector.broadcast %cst_7 : f32 to vector<256x16xf32>
    %12 = arith.addf %11, %10 : vector<256x16xf32>
    %13 = arith.mulf %7, %12 : vector<256x16xf32>
    %c0_8 = arith.constant 0 : index
    %c0_9 = arith.constant 0 : index
    %14 = vector.load %arg5[%c0_8, %c0_9] : memref<16x1xf32, #tpu.memory_space<vmem>>, vector<16x1xf32>
    %cst_10 = arith.constant dense<0.000000e+00> : vector<256x1xf32>
    %15 = tpu.matmul %13, %14, %cst_10 {dimension_numbers = #tpu.dot_dimension_numbers<[1], [0], [0], [1], [0, 0, 1, 1], [], []>} : vector<256x16xf32>, vector<16x1xf32>, vector<256x1xf32> -> vector<256x1xf32>
    %c0_11 = arith.constant 0 : index
    %c0_12 = arith.constant 0 : index
    %16 = memref.load %arg6[%c0_11, %c0_12] : memref<1x1xf32, #tpu.memory_space<smem>>
    %17 = vector.broadcast %16 : f32 to vector<256x1xf32>
    %18 = arith.addf %15, %17 : vector<256x1xf32>
    %c0_13 = arith.constant 0 : index
    %c0_14 = arith.constant 0 : index
    %19 = vector.load %arg2[%c0_13, %c0_14] : memref<256x1xf32, #tpu.memory_space<vmem>>, vector<256x1xf32>
    %20 = arith.mulf %18, %19 : vector<256x1xf32>
    %cst_15 = arith.constant 0.000000e+00 : f32
    %21 = vector.broadcast %cst_15 : f32 to vector<256x1xf32>
    %22 = arith.cmpf oeq, %20, %21 : vector<256x1xf32>
    %cst_16 = arith.constant -0.00899999961 : f32
    %23 = vector.broadcast %cst_16 : f32 to vector<256x1xf32>
    %24 = arith.select %22, %23, %20 : vector<256x1xi1>, vector<256x1xf32>
    %25 = arith.negf %24 : vector<256x1xf32>
    %26 = math.exp %25 : vector<256x1xf32>
    %cst_17 = arith.constant 1.000000e+00 : f32
    %27 = vector.broadcast %cst_17 : f32 to vector<256x1xf32>
    %28 = arith.addf %27, %26 : vector<256x1xf32>
    %29 = arith.divf %27, %28 : vector<256x1xf32>
    %c0_18 = arith.constant 0 : index
    %c0_19 = arith.constant 0 : index
    %30 = vector.load %arg7[%c0_18, %c0_19] : memref<256x1xf32, #tpu.memory_space<vmem>>, vector<256x1xf32>
    tpu.vector_store %arg7[%c0_18, %c0_19], %29 {strides = array<i32>} : memref<256x1xf32, #tpu.memory_space<vmem>>, vector<256x1xf32>,
    return
  }
  func.func @transform_0(%arg0: i32) -> (i32, i32) {
    %c0_i32 = arith.constant 0 : i32
    %c0_i32_0 = arith.constant 0 : i32
    return %arg0, %c0_i32 : i32, i32
  }
  func.func @transform_1(%arg0: i32) -> (i32, i32) {
    %c0_i32 = arith.constant 0 : i32
    %c0_i32_0 = arith.constant 0 : i32
    return %arg0, %c0_i32 : i32, i32
  }
  func.func @transform_2(%arg0: i32) -> (i32, i32) {
    %c0_i32 = arith.constant 0 : i32
    %c0_i32_0 = arith.constant 0 : i32
    %c0_i32_1 = arith.constant 0 : i32
    return %c0_i32, %c0_i32_0 : i32, i32
  }
  func.func @transform_3(%arg0: i32) -> (i32, i32) {
    %c0_i32 = arith.constant 0 : i32
    %c0_i32_0 = arith.constant 0 : i32
    %c0_i32_1 = arith.constant 0 : i32
    return %c0_i32, %c0_i32_0 : i32, i32
  }
  func.func @transform_4(%arg0: i32) -> (i32, i32) {
    %c0_i32 = arith.constant 0 : i32
    %c0_i32_0 = arith.constant 0 : i32
    %c0_i32_1 = arith.constant 0 : i32
    return %c0_i32, %c0_i32_0 : i32, i32
  }
  func.func @transform_5(%arg0: i32) -> (i32, i32) {
    %c0_i32 = arith.constant 0 : i32
    %c0_i32_0 = arith.constant 0 : i32
    %c0_i32_1 = arith.constant 0 : i32
    return %c0_i32, %c0_i32_0 : i32, i32
  }
  func.func @transform_6(%arg0: i32) -> (i32, i32) {
    %c0_i32 = arith.constant 0 : i32
    %c0_i32_0 = arith.constant 0 : i32
    return %arg0, %c0_i32 : i32, i32
  }
}

</mosaic_0001>

<llo_original>
// kernel: exab_classifier_head.1
$region0: #{exab_classifier_head.1}
  #allocation0 [shape = 'u32[]', space=smem, size = 0x4, offset = 0x4, fixed_abs, tag = 'smem constant byte address 0x4 - core index']
  #allocation1 [shape = 'u32[72,128]{1,0:T(1,128)}', space=vmem, size = 0x9000, scoped, tag = 'internal scratch']
  #allocation2 [shape = 'f32[1,1]{1,0:T(1,128)S(6)}', space=smem, size = 0x200, scoped, tag = 'scoped memory for exab_classifier_head.1']
  %s0 = inlined_call_operand.vmem [shape: bf16[256,32], index: 0, kind: input, shape index: {}]
  %s1 = inlined_call_operand.vmem [shape: f32[256,1], index: 1, kind: input, shape index: {}]
  %s2 = inlined_call_operand.vmem [shape: bf16[32,16], index: 2, kind: input, shape index: {}]
  %s3 = inlined_call_operand.vmem [shape: f32[1,16], index: 3, kind: input, shape index: {}]
  %s4 = inlined_call_operand.vmem [shape: f32[16,1], index: 4, kind: input, shape index: {}]
  %s5 = inlined_call_operand.<no memory space> [shape: f32[1,1], index: 5, kind: input, shape index: {}]
  %s6 = inlined_call_operand.vmem [shape: f32[256,1], index: 6, kind: output, shape index: {}]
  %s7 = sld [smem:[#allocation0]]
  $region34: #{exab_classifier_head.1} parent=0
    _
  %s9 = ssub.s32 1, %s7
  %s10 = scalar_select 0, %s9, %s7
  %11 = sst [smem:[#allocation2]] %s5
  // Predicated region
  $region2: #{exab_classifier_head.1} parent=0 // pred_check
    _
  $region3: #{exab_classifier_head.1} parent=0 // pred_check_branch
    %13 = sbr.rel (0) target = $region5
  $region4: #{exab_classifier_head.1} parent=0 // pred_region
    _
  $region5: #{exab_classifier_head.1} parent=0 // pred_fallthru
    _
  // Predicated region
  $region6: #{exab_classifier_head.1} parent=0 // pred_check
    _
  $region7: #{exab_classifier_head.1} parent=0 // pred_check_branch
    %15 = sbr.rel (0) target = $region9
  $region8: #{exab_classifier_head.1} parent=0 // pred_region
    _
  $region9: #{exab_classifier_head.1} parent=0 // pred_fallthru
    _
  // Predicated region
  $region10: #{exab_classifier_head.1} parent=0 // pred_check
    _
  $region11: #{exab_classifier_head.1} parent=0 // pred_check_branch
    %17 = sbr.rel (0) target = $region13
  $region12: #{exab_classifier_head.1} parent=0 // pred_region
    _
  $region13: #{exab_classifier_head.1} parent=0 // pred_fallthru
    _
  // Predicated region
  $region14: #{exab_classifier_head.1} parent=0 // pred_check
    _
  $region15: #{exab_classifier_head.1} parent=0 // pred_check_branch
    %19 = sbr.rel (0) target = $region17
  $region16: #{exab_classifier_head.1} parent=0 // pred_region
    _
  $region17: #{exab_classifier_head.1} parent=0 // pred_fallthru
    _
  // Predicated region
  $region18: #{exab_classifier_head.1} parent=0 // pred_check
    _
  $region19: #{exab_classifier_head.1} parent=0 // pred_check_branch
    %21 = sbr.rel (0) target = $region21
  $region20: #{exab_classifier_head.1} parent=0 // pred_region
    _
  $region21: #{exab_classifier_head.1} parent=0 // pred_fallthru
    _
  // Predicated region
  $region22: #{exab_classifier_head.1} parent=0 // pred_check
    _
  $region23: #{exab_classifier_head.1} parent=0 // pred_check_branch
    %23 = sbr.rel (0) target = $region25
  $region24: #{exab_classifier_head.1} parent=0 // pred_region
    _
  $region25: #{exab_classifier_head.1} parent=0 // pred_fallthru
    _
  %v25 = vld [vmem:[%s0] sm:$0xf]
  %v26 = vld [vmem:[%s0 + $0x4] sm:$0xf]
  %v27 = vld [vmem:[%s0 + $0x8] sm:$0xf]
  %v28 = vld [vmem:[%s0 + $0xc] sm:$0xf]
  %v29 = vld [vmem:[%s0 + $0x10] sm:$0xf]
  %v30 = vld [vmem:[%s0 + $0x14] sm:$0xf]
  %v31 = vld [vmem:[%s0 + $0x18] sm:$0xf]
  %v32 = vld [vmem:[%s0 + $0x1c] sm:$0xf]
  %v33 = vld [vmem:[%s0 + $0x20] sm:$0xf]
  %v34 = vld [vmem:[%s0 + $0x24] sm:$0xf]
  %v35 = vld [vmem:[%s0 + $0x28] sm:$0xf]
  %v36 = vld [vmem:[%s0 + $0x2c] sm:$0xf]
  %v37 = vld [vmem:[%s0 + $0x30] sm:$0xf]
  %v38 = vld [vmem:[%s0 + $0x34] sm:$0xf]
  %v39 = vld [vmem:[%s0 + $0x38] sm:$0xf]
  %v40 = vld [vmem:[%s0 + $0x3c] sm:$0xf]
  %v41 = vld [vmem:[%s0 + $0x40] sm:$0xf]
  %v42 = vld [vmem:[%s0 + $0x44] sm:$0xf]
  %v43 = vld [vmem:[%s0 + $0x48] sm:$0xf]
  %v44 = vld [vmem:[%s0 + $0x4c] sm:$0xf]
  %v45 = vld [vmem:[%s0 + $0x50] sm:$0xf]
  %v46 = vld [vmem:[%s0 + $0x54] sm:$0xf]
  %v47 = vld [vmem:[%s0 + $0x58] sm:$0xf]
  %v48 = vld [vmem:[%s0 + $0x5c] sm:$0xf]
  %v49 = vld [vmem:[%s0 + $0x60] sm:$0xf]
  %v50 = vld [vmem:[%s0 + $0x64] sm:$0xf]
  %v51 = vld [vmem:[%s0 + $0x68] sm:$0xf]
  %v52 = vld [vmem:[%s0 + $0x6c] sm:$0xf]
  %v53 = vld [vmem:[%s0 + $0x70] sm:$0xf]
  %v54 = vld [vmem:[%s0 + $0x74] sm:$0xf]
  %v55 = vld [vmem:[%s0 + $0x78] sm:$0xf]
  %v56 = vld [vmem:[%s0 + $0x7c] sm:$0xf]
  %v57 = vld [vmem:[%s2] sm:$0xf]
  %v58 = vld [vmem:[%s2 + $0x4] sm:$0xf]
  %v59 = vld [vmem:[%s2 + $0x8] sm:$0xf]
  %v60 = vld [vmem:[%s2 + $0xc] sm:$0xf]
  %v61 = vld [vmem:[%s3] sm:$0x1]
  %v63 = vperm.slane %v61, 0
  %v97 = vunpack.c.l.b16 %v25
  %v98 = vunpack.c.l.b16 %v26
  %v99 = vunpack.c.l.b16 %v27
  %v100 = vunpack.c.l.b16 %v28
  %v101 = vunpack.c.l.b16 %v29
  %v102 = vunpack.c.l.b16 %v30
  %v103 = vunpack.c.l.b16 %v31
  %v104 = vunpack.c.l.b16 %v32
  %v105 = vunpack.c.l.b16 %v33
  %v106 = vunpack.c.l.b16 %v34
  %v107 = vunpack.c.l.b16 %v35
  %v108 = vunpack.c.l.b16 %v36
  %v109 = vunpack.c.l.b16 %v37
  %v110 = vunpack.c.l.b16 %v38
  %v111 = vunpack.c.l.b16 %v39
  %v112 = vunpack.c.l.b16 %v40
  %v113 = vunpack.c.l.b16 %v41
  %v114 = vunpack.c.l.b16 %v42
  %v115 = vunpack.c.l.b16 %v43
  %v116 = vunpack.c.l.b16 %v44
  %v117 = vunpack.c.l.b16 %v45
  %v118 = vunpack.c.l.b16 %v46
  %v119 = vunpack.c.l.b16 %v47
  %v120 = vunpack.c.l.b16 %v48
  %v121 = vunpack.c.l.b16 %v49
  %v122 = vunpack.c.l.b16 %v50
  %v123 = vunpack.c.l.b16 %v51
  %v124 = vunpack.c.l.b16 %v52
  %v125 = vunpack.c.l.b16 %v53
  %v126 = vunpack.c.l.b16 %v54
  %v127 = vunpack.c.l.b16 %v55
  %v128 = vunpack.c.l.b16 %v56
  %v129 = vpack.c.b16 %v98, %v97
  %v130 = vpack.c.b16 %v100, %v99
  %v131 = vpack.c.b16 %v102, %v101
  %v132 = vpack.c.b16 %v104, %v103
  %v133 = vpack.c.b16 %v106, %v105
  %v134 = vpack.c.b16 %v108, %v107
  %v135 = vpack.c.b16 %v110, %v109
  %v136 = vpack.c.b16 %v112, %v111
  %v137 = vpack.c.b16 %v114, %v113
  %v138 = vpack.c.b16 %v116, %v115
  %v139 = vpack.c.b16 %v118, %v117
  %v140 = vpack.c.b16 %v120, %v119
  %v141 = vpack.c.b16 %v122, %v121
  %v142 = vpack.c.b16 %v124, %v123
  %v143 = vpack.c.b16 %v126, %v125
  %v144 = vpack.c.b16 %v128, %v127
  %v149 = vunpack.c.l.b16 %v57
  %v150 = vunpack.c.l.b16 %v58
  %v151 = vunpack.c.l.b16 %v59
  %v152 = vunpack.c.l.b16 %v60
  %v153 = vpack.c.b16 %v150, %v149
  %v154 = vpack.c.b16 %v152, %v151
  %vm157 = vcmask 261120
  %v159 = vsel %vm157, %v129, 0
  %v162 = vsel %vm157, %v130, 0
  %v165 = vsel %vm157, %v131, 0
  %v168 = vsel %vm157, %v132, 0
  %v171 = vsel %vm157, %v133, 0
  %v174 = vsel %vm157, %v134, 0
  %v177 = vsel %vm157, %v135, 0
  %v180 = vsel %vm157, %v136, 0
  %v183 = vsel %vm157, %v137, 0
  %v186 = vsel %vm157, %v138, 0
  %v189 = vsel %vm157, %v139, 0
  %v192 = vsel %vm157, %v140, 0
  %v195 = vsel %vm157, %v141, 0
  %v198 = vsel %vm157, %v142, 0
  %v201 = vsel %vm157, %v143, 0
  %v204 = vsel %vm157, %v144, 0
  %206 = vmatpush.bf16.msra.mxu0 0
  %207 = vmatpush.bf16.msra.mxu0 0
  %208 = vmatpush.bf16.msra.mxu0 0
  %209 = vmatpush.bf16.msra.mxu0 0
  %210 = vmatpush.bf16.msra.mxu0 0
  %211 = vmatpush.bf16.msra.mxu0 0
  %212 = vmatpush.bf16.msra.mxu0 %v154
  %213 = vmatpush.bf16.msra.mxu0 %v153
  %214 = vmatmul.bf16.gmra.mxu0 %v159
  %v215 = vpop.f32.mrf.mxu0
  %v216 = vadd.f32 %v63, %v215
  %v217 = vpop.f32.mrf.mxu0
  %v218 = vadd.f32 %v63, %v217
  %219 = vmatmul.bf16.gmra.mxu0 %v162
  %v220 = vpop.f32.mrf.mxu0
  %v221 = vadd.f32 %v63, %v220
  %v222 = vpop.f32.mrf.mxu0
  %v223 = vadd.f32 %v63, %v222
  %224 = vmatmul.bf16.gmra.mxu0 %v165
  %v225 = vpop.f32.mrf.mxu0
  %v226 = vadd.f32 %v63, %v225
  %v227 = vpop.f32.mrf.mxu0
  %v228 = vadd.f32 %v63, %v227
  %229 = vmatmul.bf16.gmra.mxu0 %v168
  %v230 = vpop.f32.mrf.mxu0
  %v231 = vadd.f32 %v63, %v230
  %v232 = vpop.f32.mrf.mxu0
  %v233 = vadd.f32 %v63, %v232
  %234 = vmatmul.bf16.gmra.mxu0 %v171
  %v235 = vpop.f32.mrf.mxu0
  %v236 = vadd.f32 %v63, %v235
  %v237 = vpop.f32.mrf.mxu0
  %v238 = vadd.f32 %v63, %v237
  %239 = vmatmul.bf16.gmra.mxu0 %v174
  %v240 = vpop.f32.mrf.mxu0
  %v241 = vadd.f32 %v63, %v240
  %v242 = vpop.f32.mrf.mxu0
  %v243 = vadd.f32 %v63, %v242
  %244 = vmatmul.bf16.gmra.mxu0 %v177
  %v245 = vpop.f32.mrf.mxu0
  %v246 = vadd.f32 %v63, %v245
  %v247 = vpop.f32.mrf.mxu0
  %v248 = vadd.f32 %v63, %v247
  %249 = vmatmul.bf16.gmra.mxu0 %v180
  %v250 = vpop.f32.mrf.mxu0
  %v251 = vadd.f32 %v63, %v250
  %v252 = vpop.f32.mrf.mxu0
  %v253 = vadd.f32 %v63, %v252
  %254 = vmatmul.bf16.gmra.mxu0 %v183
  %v255 = vpop.f32.mrf.mxu0
  %v256 = vadd.f32 %v63, %v255
  %v257 = vpop.f32.mrf.mxu0
  %v258 = vadd.f32 %v63, %v257
  %259 = vmatmul.bf16.gmra.mxu0 %v186
  %v260 = vpop.f32.mrf.mxu0
  %v261 = vadd.f32 %v63, %v260
  %v262 = vpop.f32.mrf.mxu0
  %v263 = vadd.f32 %v63, %v262
  %264 = vmatmul.bf16.gmra.mxu0 %v189
  %v265 = vpop.f32.mrf.mxu0
  %v266 = vadd.f32 %v63, %v265
  %v267 = vpop.f32.mrf.mxu0
  %v268 = vadd.f32 %v63, %v267
  %269 = vmatmul.bf16.gmra.mxu0 %v192
  %v270 = vpop.f32.mrf.mxu0
  %v271 = vadd.f32 %v63, %v270
  %v272 = vpop.f32.mrf.mxu0
  %v273 = vadd.f32 %v63, %v272
  %274 = vmatmul.bf16.gmra.mxu0 %v195
  %v275 = vpop.f32.mrf.mxu0
  %v276 = vadd.f32 %v63, %v275
  %v277 = vpop.f32.mrf.mxu0
  %v278 = vadd.f32 %v63, %v277
  %279 = vmatmul.bf16.gmra.mxu0 %v198
  %v280 = vpop.f32.mrf.mxu0
  %v281 = vadd.f32 %v63, %v280
  %v282 = vpop.f32.mrf.mxu0
  %v283 = vadd.f32 %v63, %v282
  %284 = vmatmul.bf16.gmra.mxu0 %v201
  %v285 = vpop.f32.mrf.mxu0
  %v286 = vadd.f32 %v63, %v285
  %v287 = vpop.f32.mrf.mxu0
  %v288 = vadd.f32 %v63, %v287
  %289 = vmatmul.bf16.gmra.mxu0 %v204
  %v290 = vpop.f32.mrf.mxu0
  %v291 = vadd.f32 %v63, %v290
  %v292 = vpop.f32.mrf.mxu0
  %v293 = vadd.f32 %v63, %v292
  %294 = vdwg.mxu0
  %v295 = vmul.f32 %v216, 0.5
  %v296 = vmul.f32 %v218, 0.5
  %v297 = vmul.f32 %v221, 0.5
  %v298 = vmul.f32 %v223, 0.5
  %v299 = vmul.f32 %v226, 0.5
  %v300 = vmul.f32 %v228, 0.5
  %v301 = vmul.f32 %v231, 0.5
  %v302 = vmul.f32 %v233, 0.5
  %v303 = vmul.f32 %v236, 0.5
  %v304 = vmul.f32 %v238, 0.5
  %v305 = vmul.f32 %v241, 0.5
  %v306 = vmul.f32 %v243, 0.5
  %v307 = vmul.f32 %v246, 0.5
  %v308 = vmul.f32 %v248, 0.5
  %v309 = vmul.f32 %v251, 0.5
  %v310 = vmul.f32 %v253, 0.5
  %v311 = vmul.f32 %v256, 0.5
  %v312 = vmul.f32 %v258, 0.5
  %v313 = vmul.f32 %v261, 0.5
  %v314 = vmul.f32 %v263, 0.5
  %v315 = vmul.f32 %v266, 0.5
  %v316 = vmul.f32 %v268, 0.5
  %v317 = vmul.f32 %v271, 0.5
  %v318 = vmul.f32 %v273, 0.5
  %v319 = vmul.f32 %v276, 0.5
  %v320 = vmul.f32 %v278, 0.5
  %v321 = vmul.f32 %v281, 0.5
  %v322 = vmul.f32 %v283, 0.5
  %v323 = vmul.f32 %v286, 0.5
  %v324 = vmul.f32 %v288, 0.5
  %v325 = vmul.f32 %v291, 0.5
  %v326 = vmul.f32 %v293, 0.5
  %v327 = vmul.f32 %v216, 0.70710677
  %v328 = vmul.f32 %v218, 0.70710677
  %v329 = vmul.f32 %v221, 0.70710677
  %v330 = vmul.f32 %v223, 0.70710677
  %v331 = vmul.f32 %v226, 0.70710677
  %v332 = vmul.f32 %v228, 0.70710677
  %v333 = vmul.f32 %v231, 0.70710677
  %v334 = vmul.f32 %v233, 0.70710677
  %v335 = vmul.f32 %v236, 0.70710677
  %v336 = vmul.f32 %v238, 0.70710677
  %v337 = vmul.f32 %v241, 0.70710677
  %v338 = vmul.f32 %v243, 0.70710677
  %v339 = vmul.f32 %v246, 0.70710677
  %v340 = vmul.f32 %v248, 0.70710677
  %v341 = vmul.f32 %v251, 0.70710677
  %v342 = vmul.f32 %v253, 0.70710677
  %v343 = vmul.f32 %v256, 0.70710677
  %v344 = vmul.f32 %v258, 0.70710677
  %v345 = vmul.f32 %v261, 0.70710677
  %v346 = vmul.f32 %v263, 0.70710677
  %v347 = vmul.f32 %v266, 0.70710677
  %v348 = vmul.f32 %v268, 0.70710677
  %v349 = vmul.f32 %v271, 0.70710677
  %v350 = vmul.f32 %v273, 0.70710677
  %v351 = vmul.f32 %v276, 0.70710677
  %v352 = vmul.f32 %v278, 0.70710677
  %v353 = vmul.f32 %v281, 0.70710677
  %v354 = vmul.f32 %v283, 0.70710677
  %v355 = vmul.f32 %v286, 0.70710677
  %v356 = vmul.f32 %v288, 0.70710677
  %v357 = vmul.f32 %v291, 0.70710677
  %v358 = vmul.f32 %v293, 0.70710677
  %v359 = vmul.f32 %v327, %v327
  %v360 = vmin.f32 16.0, %v359
  %v361 = vmul.f32 %v360, 2.1237322e-06
  %v362 = vadd.f32 %v361, 0.00028619796
  %v363 = vmul.f32 %v360, %v362
  %v364 = vadd.f32 %v363, 0.0036580483
  %v365 = vmul.f32 %v360, %v364
  %v366 = vadd.f32 %v365, 0.05243302
  %v367 = vmul.f32 %v360, %v366
  %v368 = vadd.f32 %v367, 0.18741608
  %v369 = vmul.f32 %v360, %v368
  %v370 = vadd.f32 %v369, 1.1283791
  %v371 = vmul.f32 %v327, %v370
  %v372 = vmul.f32 %v360, 3.8918573e-05
  %v373 = vadd.f32 %v372, 0.001143296
  %v374 = vmul.f32 %v360, %v373
  %v375 = vadd.f32 %v374, 0.014752088
  %v376 = vmul.f32 %v360, %v375
  %v377 = vadd.f32 %v376, 0.112945676
  %v378 = vmul.f32 %v360, %v377
  %v379 = vadd.f32 %v378, 0.4994258
  %v380 = vmul.f32 %v360, %v379
  %v381 = vadd.f32 %v380, 1.0
  %v382 = vrcp.pop %v381
  %v383 = vmul.f32 %v381, %v382
  %v384 = vsub.f32 1.0, %v383
  %v385 = vmul.f32 %v382, %v384
  %v386 = vadd.f32 %v382, %v385
  %vm387 = vweird.f32 %v381
  %vm388 = vweird.f32 %v382
  %vm389 = vmor %vm387, %vm388
  %v390 = vsel %vm389, %v382, %v386
  %v391 = vand.u32 2147483647, %v381
  %vm392 = vcmp.eq.f32.partialorder %v391, 8.507059e+37
  %v393 = vand.u32 %v381, 2147483648
  %v394 = vor.u32 1.1754944e-38, %v393
  %v395 = vsel %vm392, %v394, %v390
  %v396 = vmul.f32 %v371, %v395
  %v397 = vmin.f32 %v396, 1.0
  %v398 = vmax.f32 %v397, -1.0
  %v399 = vmul.f32 %v328, %v328
  %v400 = vmin.f32 16.0, %v399
  %v401 = vmul.f32 %v400, 2.1237322e-06
  %v402 = vadd.f32 %v401, 0.00028619796
  %v403 = vmul.f32 %v400, %v402
  %v404 = vadd.f32 %v403, 0.0036580483
  %v405 = vmul.f32 %v400, %v404
  %v406 = vadd.f32 %v405, 0.05243302
  %v407 = vmul.f32 %v400, %v406
  %v408 = vadd.f32 %v407, 0.18741608
  %v409 = vmul.f32 %v400, %v408
  %v410 = vadd.f32 %v409, 1.1283791
  %v411 = vmul.f32 %v328, %v410
  %v412 = vmul.f32 %v400, 3.8918573e-05
  %v413 = vadd.f32 %v412, 0.001143296
  %v414 = vmul.f32 %v400, %v413
  %v415 = vadd.f32 %v414, 0.014752088
  %v416 = vmul.f32 %v400, %v415
  %v417 = vadd.f32 %v416, 0.112945676
  %v418 = vmul.f32 %v400, %v417
  %v419 = vadd.f32 %v418, 0.4994258
  %v420 = vmul.f32 %v400, %v419
  %v421 = vadd.f32 %v420, 1.0
  %v422 = vrcp.pop %v421
  %v423 = vmul.f32 %v421, %v422
  %v424 = vsub.f32 1.0, %v423
  %v425 = vmul.f32 %v422, %v424
  %v426 = vadd.f32 %v422, %v425
  %vm427 = vweird.f32 %v421
  %vm428 = vweird.f32 %v422
  %vm429 = vmor %vm427, %vm428
  %v430 = vsel %vm429, %v422, %v426
  %v431 = vand.u32 2147483647, %v421
  %vm432 = vcmp.eq.f32.partialorder %v431, 8.507059e+37
  %v433 = vand.u32 %v421, 2147483648
  %v434 = vor.u32 1.1754944e-38, %v433
  %v435 = vsel %vm432, %v434, %v430
  %v436 = vmul.f32 %v411, %v435
  %v437 = vmin.f32 %v436, 1.0
  %v438 = vmax.f32 %v437, -1.0
  %v439 = vmul.f32 %v329, %v329
  %v440 = vmin.f32 16.0, %v439
  %v441 = vmul.f32 %v440, 2.1237322e-06
  %v442 = vadd.f32 %v441, 0.00028619796
  %v443 = vmul.f32 %v440, %v442
  %v444 = vadd.f32 %v443, 0.0036580483
  %v445 = vmul.f32 %v440, %v444
  %v446 = vadd.f32 %v445, 0.05243302
  %v447 = vmul.f32 %v440, %v446
  %v448 = vadd.f32 %v447, 0.18741608
  %v449 = vmul.f32 %v440, %v448
  %v450 = vadd.f32 %v449, 1.1283791
  %v451 = vmul.f32 %v329, %v450
  %v452 = vmul.f32 %v440, 3.8918573e-05
  %v453 = vadd.f32 %v452, 0.001143296
  %v454 = vmul.f32 %v440, %v453
  %v455 = vadd.f32 %v454, 0.014752088
  %v456 = vmul.f32 %v440, %v455
  %v457 = vadd.f32 %v456, 0.112945676
  %v458 = vmul.f32 %v440, %v457
  %v459 = vadd.f32 %v458, 0.4994258
  %v460 = vmul.f32 %v440, %v459
  %v461 = vadd.f32 %v460, 1.0
  %v462 = vrcp.pop %v461
  %v463 = vmul.f32 %v461, %v462
  %v464 = vsub.f32 1.0, %v463
  %v465 = vmul.f32 %v462, %v464
  %v466 = vadd.f32 %v462, %v465
  %vm467 = vweird.f32 %v461
  %vm468 = vweird.f32 %v462
  %vm469 = vmor %vm467, %vm468
  %v470 = vsel %vm469, %v462, %v466
  %v471 = vand.u32 2147483647, %v461
  %vm472 = vcmp.eq.f32.partialorder %v471, 8.507059e+37
  %v473 = vand.u32 %v461, 2147483648
  %v474 = vor.u32 1.1754944e-38, %v473
  %v475 = vsel %vm472, %v474, %v470
  %v476 = vmul.f32 %v451, %v475
  %v477 = vmin.f32 %v476, 1.0
  %v478 = vmax.f32 %v477, -1.0
  %v479 = vmul.f32 %v330, %v330
  %v480 = vmin.f32 16.0, %v479
  %v481 = vmul.f32 %v480, 2.1237322e-06
  %v482 = vadd.f32 %v481, 0.00028619796
  %v483 = vmul.f32 %v480, %v482
  %v484 = vadd.f32 %v483, 0.0036580483
  %v485 = vmul.f32 %v480, %v484
  %v486 = vadd.f32 %v485, 0.05243302
  %v487 = vmul.f32 %v480, %v486
  %v488 = vadd.f32 %v487, 0.18741608
  %v489 = vmul.f32 %v480, %v488
  %v490 = vadd.f32 %v489, 1.1283791
  %v491 = vmul.f32 %v330, %v490
  %v492 = vmul.f32 %v480, 3.8918573e-05
  %v493 = vadd.f32 %v492, 0.001143296
  %v494 = vmul.f32 %v480, %v493
  %v495 = vadd.f32 %v494, 0.014752088
  %v496 = vmul.f32 %v480, %v495
  %v497 = vadd.f32 %v496, 0.112945676
  %v498 = vmul.f32 %v480, %v497
  %v499 = vadd.f32 %v498, 0.4994258
  %v500 = vmul.f32 %v480, %v499
  %v501 = vadd.f32 %v500, 1.0
  %v502 = vrcp.pop %v501
  %v503 = vmul.f32 %v501, %v502
  %v504 = vsub.f32 1.0, %v503
  %v505 = vmul.f32 %v502, %v504
  %v506 = vadd.f32 %v502, %v505
  %vm507 = vweird.f32 %v501
  %vm508 = vweird.f32 %v502
  %vm509 = vmor %vm507, %vm508
  %v510 = vsel %vm509, %v502, %v506
  %v511 = vand.u32 2147483647, %v501
  %vm512 = vcmp.eq.f32.partialorder %v511, 8.507059e+37
  %v513 = vand.u32 %v501, 2147483648
  %v514 = vor.u32 1.1754944e-38, %v513
  %v515 = vsel %vm512, %v514, %v510
  %v516 = vmul.f32 %v491, %v515
  %v517 = vmin.f32 %v516, 1.0
  %v518 = vmax.f32 %v517, -1.0
  %v519 = vmul.f32 %v331, %v331
  %v520 = vmin.f32 16.0, %v519
  %v521 = vmul.f32 %v520, 2.1237322e-06
  %v522 = vadd.f32 %v521, 0.00028619796
  %v523 = vmul.f32 %v520, %v522
  %v524 = vadd.f32 %v523, 0.0036580483
  %v525 = vmul.f32 %v520, %v524
  %v526 = vadd.f32 %v525, 0.05243302
  %v527 = vmul.f32 %v520, %v526
  %v528 = vadd.f32 %v527, 0.18741608
  %v529 = vmul.f32 %v520, %v528
  %v530 = vadd.f32 %v529, 1.1283791
  %v531 = vmul.f32 %v331, %v530
  %v532 = vmul.f32 %v520, 3.8918573e-05
  %v533 = vadd.f32 %v532, 0.001143296
  %v534 = vmul.f32 %v520, %v533
  %v535 = vadd.f32 %v534, 0.014752088
  %v536 = vmul.f32 %v520, %v535
  %v537 = vadd.f32 %v536, 0.112945676
  %v538 = vmul.f32 %v520, %v537
  %v539 = vadd.f32 %v538, 0.4994258
  %v540 = vmul.f32 %v520, %v539
  %v541 = vadd.f32 %v540, 1.0
  %v542 = vrcp.pop %v541
  %v543 = vmul.f32 %v541, %v542
  %v544 = vsub.f32 1.0, %v543
  %v545 = vmul.f32 %v542, %v544
  %v546 = vadd.f32 %v542, %v545
  %vm547 = vweird.f32 %v541
  %vm548 = vweird.f32 %v542
  %vm549 = vmor %vm547, %vm548
  %v550 = vsel %vm549, %v542, %v546
  %v551 = vand.u32 2147483647, %v541
  %vm552 = vcmp.eq.f32.partialorder %v551, 8.507059e+37
  %v553 = vand.u32 %v541, 2147483648
  %v554 = vor.u32 1.1754944e-38, %v553
  %v555 = vsel %vm552, %v554, %v550
  %v556 = vmul.f32 %v531, %v555
  %v557 = vmin.f32 %v556, 1.0
  %v558 = vmax.f32 %v557, -1.0
  %v559 = vmul.f32 %v332, %v332
  %v560 = vmin.f32 16.0, %v559
  %v561 = vmul.f32 %v560, 2.1237322e-06
  %v562 = vadd.f32 %v561, 0.00028619796
  %v563 = vmul.f32 %v560, %v562
  %v564 = vadd.f32 %v563, 0.0036580483
  %v565 = vmul.f32 %v560, %v564
  %v566 = vadd.f32 %v565, 0.05243302
  %v567 = vmul.f32 %v560, %v566
  %v568 = vadd.f32 %v567, 0.18741608
  %v569 = vmul.f32 %v560, %v568
  %v570 = vadd.f32 %v569, 1.1283791
  %v571 = vmul.f32 %v332, %v570
  %v572 = vmul.f32 %v560, 3.8918573e-05
  %v573 = vadd.f32 %v572, 0.001143296
  %v574 = vmul.f32 %v560, %v573
  %v575 = vadd.f32 %v574, 0.014752088
  %v576 = vmul.f32 %v560, %v575
  %v577 = vadd.f32 %v576, 0.112945676
  %v578 = vmul.f32 %v560, %v577
  %v579 = vadd.f32 %v578, 0.4994258
  %v580 = vmul.f32 %v560, %v579
  %v581 = vadd.f32 %v580, 1.0
  %v582 = vrcp.pop %v581
  %v583 = vmul.f32 %v581, %v582
  %v584 = vsub.f32 1.0, %v583
  %v585 = vmul.f32 %v582, %v584
  %v586 = vadd.f32 %v582, %v585
  %vm587 = vweird.f32 %v581
  %vm588 = vweird.f32 %v582
  %vm589 = vmor %vm587, %vm588
  %v590 = vsel %vm589, %v582, %v586
  %v591 = vand.u32 2147483647, %v581
  %vm592 = vcmp.eq.f32.partialorder %v591, 8.507059e+37
  %v593 = vand.u32 %v581, 2147483648
  %v594 = vor.u32 1.1754944e-38, %v593
  %v595 = vsel %vm592, %v594, %v590
  %v596 = vmul.f32 %v571, %v595
  %v597 = vmin.f32 %v596, 1.0
  %v598 = vmax.f32 %v597, -1.0
  %v599 = vmul.f32 %v333, %v333
  %v600 = vmin.f32 16.0, %v599
  %v601 = vmul.f32 %v600, 2.1237322e-06
  %v602 = vadd.f32 %v601, 0.00028619796
  %v603 = vmul.f32 %v600, %v602
  %v604 = vadd.f32 %v603, 0.0036580483
  %v605 = vmul.f32 %v600, %v604
  %v606 = vadd.f32 %v605, 0.05243302
  %v607 = vmul.f32 %v600, %v606
  %v608 = vadd.f32 %v607, 0.18741608
  %v609 = vmul.f32 %v600, %v608
  %v610 = vadd.f32 %v609, 1.1283791
  %v611 = vmul.f32 %v333, %v610
  %v612 = vmul.f32 %v600, 3.8918573e-05
  %v613 = vadd.f32 %v612, 0.001143296
  %v614 = vmul.f32 %v600, %v613
  %v615 = vadd.f32 %v614, 0.014752088
  %v616 = vmul.f32 %v600, %v615
  %v617 = vadd.f32 %v616, 0.112945676
  %v618 = vmul.f32 %v600, %v617
  %v619 = vadd.f32 %v618, 0.4994258
  %v620 = vmul.f32 %v600, %v619
  %v621 = vadd.f32 %v620, 1.0
  %v622 = vrcp.pop %v621
  %v623 = vmul.f32 %v621, %v622
  %v624 = vsub.f32 1.0, %v623
  %v625 = vmul.f32 %v622, %v624
  %v626 = vadd.f32 %v622, %v625
  %vm627 = vweird.f32 %v621
  %vm628 = vweird.f32 %v622
  %vm629 = vmor %vm627, %vm628
  %v630 = vsel %vm629, %v622, %v626
  %v631 = vand.u32 2147483647, %v621
  %vm632 = vcmp.eq.f32.partialorder %v631, 8.507059e+37
  %v633 = vand.u32 %v621, 2147483648
  %v634 = vor.u32 1.1754944e-38, %v633
  %v635 = vsel %vm632, %v634, %v630
  %v636 = vmul.f32 %v611, %v635
  %v637 = vmin.f32 %v636, 1.0
  %v638 = vmax.f32 %v637, -1.0
  %v639 = vmul.f32 %v334, %v334
  %v640 = vmin.f32 16.0, %v639
  %v641 = vmul.f32 %v640, 2.1237322e-06
  %v642 = vadd.f32 %v641, 0.00028619796
  %v643 = vmul.f32 %v640, %v642
  %v644 = vadd.f32 %v643, 0.0036580483
  %v645 = vmul.f32 %v640, %v644
  %v646 = vadd.f32 %v645, 0.05243302
  %v647 = vmul.f32 %v640, %v646
  %v648 = vadd.f32 %v647, 0.18741608
  %v649 = vmul.f32 %v640, %v648
  %v650 = vadd.f32 %v649, 1.1283791
  %v651 = vmul.f32 %v334, %v650
  %v652 = vmul.f32 %v640, 3.8918573e-05
  %v653 = vadd.f32 %v652, 0.001143296
  %v654 = vmul.f32 %v640, %v653
  %v655 = vadd.f32 %v654, 0.014752088
  %v656 = vmul.f32 %v640, %v655
  %v657 = vadd.f32 %v656, 0.112945676
  %v658 = vmul.f32 %v640, %v657
  %v659 = vadd.f32 %v658, 0.4994258
  %v660 = vmul.f32 %v640, %v659
  %v661 = vadd.f32 %v660, 1.0
  %v662 = vrcp.pop %v661
  %v663 = vmul.f32 %v661, %v662
  %v664 = vsub.f32 1.0, %v663
  %v665 = vmul.f32 %v662, %v664
  %v666 = vadd.f32 %v662, %v665
  %vm667 = vweird.f32 %v661
  %vm668 = vweird.f32 %v662
  %vm669 = vmor %vm667, %vm668
  %v670 = vsel %vm669, %v662, %v666
  %v671 = vand.u32 2147483647, %v661
  %vm672 = vcmp.eq.f32.partialorder %v671, 8.507059e+37
  %v673 = vand.u32 %v661, 2147483648
  %v674 = vor.u32 1.1754944e-38, %v673
  %v675 = vsel %vm672, %v674, %v670
  %v676 = vmul.f32 %v651, %v675
  %v677 = vmin.f32 %v676, 1.0
  %v678 = vmax.f32 %v677, -1.0
  %v679 = vmul.f32 %v335, %v335
  %v680 = vmin.f32 16.0, %v679
  %v681 = vmul.f32 %v680, 2.1237322e-06
  %v682 = vadd.f32 %v681, 0.00028619796
  %v683 = vmul.f32 %v680, %v682
  %v684 = vadd.f32 %v683, 0.0036580483
  %v685 = vmul.f32 %v680, %v684
  %v686 = vadd.f32 %v685, 0.05243302
  %v687 = vmul.f32 %v680, %v686
  %v688 = vadd.f32 %v687, 0.18741608
  %v689 = vmul.f32 %v680, %v688
  %v690 = vadd.f32 %v689, 1.1283791
  %v691 = vmul.f32 %v335, %v690
  %v692 = vmul.f32 %v680, 3.8918573e-05
  %v693 = vadd.f32 %v692, 0.001143296
  %v694 = vmul.f32 %v680, %v693
  %v695 = vadd.f32 %v694, 0.014752088
  %v696 = vmul.f32 %v680, %v695
  %v697 = vadd.f32 %v696, 0.112945676
  %v698 = vmul.f32 %v680, %v697
  %v699 = vadd.f32 %v698, 0.4994258
  %v700 = vmul.f32 %v680, %v699
  %v701 = vadd.f32 %v700, 1.0
  %v702 = vrcp.pop %v701
  %v703 = vmul.f32 %v701, %v702
  %v704 = vsub.f32 1.0, %v703
  %v705 = vmul.f32 %v702, %v704
  %v706 = vadd.f32 %v702, %v705
  %vm707 = vweird.f32 %v701
  %vm708 = vweird.f32 %v702
  %vm709 = vmor %vm707, %vm708
  %v710 = vsel %vm709, %v702, %v706
  %v711 = vand.u32 2147483647, %v701
  %vm712 = vcmp.eq.f32.partialorder %v711, 8.507059e+37
  %v713 = vand.u32 %v701, 2147483648
  %v714 = vor.u32 1.1754944e-38, %v713
  %v715 = vsel %vm712, %v714, %v710
  %v716 = vmul.f32 %v691, %v715
  %v717 = vmin.f32 %v716, 1.0
  %v718 = vmax.f32 %v717, -1.0
  %v719 = vmul.f32 %v336, %v336
  %v720 = vmin.f32 16.0, %v719
  %v721 = vmul.f32 %v720, 2.1237322e-06
  %v722 = vadd.f32 %v721, 0.00028619796
  %v723 = vmul.f32 %v720, %v722
  %v724 = vadd.f32 %v723, 0.0036580483
  %v725 = vmul.f32 %v720, %v724
  %v726 = vadd.f32 %v725, 0.05243302
  %v727 = vmul.f32 %v720, %v726
  %v728 = vadd.f32 %v727, 0.18741608
  %v729 = vmul.f32 %v720, %v728
  %v730 = vadd.f32 %v729, 1.1283791
  %v731 = vmul.f32 %v336, %v730
  %v732 = vmul.f32 %v720, 3.8918573e-05
  %v733 = vadd.f32 %v732, 0.001143296
  %v734 = vmul.f32 %v720, %v733
  %v735 = vadd.f32 %v734, 0.014752088
  %v736 = vmul.f32 %v720, %v735
  %v737 = vadd.f32 %v736, 0.112945676
  %v738 = vmul.f32 %v720, %v737
  %v739 = vadd.f32 %v738, 0.4994258
  %v740 = vmul.f32 %v720, %v739
  %v741 = vadd.f32 %v740, 1.0
  %v742 = vrcp.pop %v741
  %v743 = vmul.f32 %v741, %v742
  %v744 = vsub.f32 1.0, %v743
  %v745 = vmul.f32 %v742, %v744
  %v746 = vadd.f32 %v742, %v745
  %vm747 = vweird.f32 %v741
  %vm748 = vweird.f32 %v742
  %vm749 = vmor %vm747, %vm748
  %v750 = vsel %vm749, %v742, %v746
  %v751 = vand.u32 2147483647, %v741
  %vm752 = vcmp.eq.f32.partialorder %v751, 8.507059e+37
  %v753 = vand.u32 %v741, 2147483648
  %v754 = vor.u32 1.1754944e-38, %v753
  %v755 = vsel %vm752, %v754, %v750
  %v756 = vmul.f32 %v731, %v755
  %v757 = vmin.f32 %v756, 1.0
  %v758 = vmax.f32 %v757, -1.0
  %v759 = vmul.f32 %v337, %v337
  %v760 = vmin.f32 16.0, %v759
  %v761 = vmul.f32 %v760, 2.1237322e-06
  %v762 = vadd.f32 %v761, 0.00028619796
  %v763 = vmul.f32 %v760, %v762
  %v764 = vadd.f32 %v763, 0.0036580483
  %v765 = vmul.f32 %v760, %v764
  %v766 = vadd.f32 %v765, 0.05243302
  %v767 = vmul.f32 %v760, %v766
  %v768 = vadd.f32 %v767, 0.18741608
  %v769 = vmul.f32 %v760, %v768
  %v770 = vadd.f32 %v769, 1.1283791
  %v771 = vmul.f32 %v337, %v770
  %v772 = vmul.f32 %v760, 3.8918573e-05
  %v773 = vadd.f32 %v772, 0.001143296
  %v774 = vmul.f32 %v760, %v773
  %v775 = vadd.f32 %v774, 0.014752088
  %v776 = vmul.f32 %v760, %v775
  %v777 = vadd.f32 %v776, 0.112945676
  %v778 = vmul.f32 %v760, %v777
  %v779 = vadd.f32 %v778, 0.4994258
  %v780 = vmul.f32 %v760, %v779
  %v781 = vadd.f32 %v780, 1.0
  %v782 = vrcp.pop %v781
  %v783 = vmul.f32 %v781, %v782
  %v784 = vsub.f32 1.0, %v783
  %v785 = vmul.f32 %v782, %v784
  %v786 = vadd.f32 %v782, %v785
  %vm787 = vweird.f32 %v781
  %vm788 = vweird.f32 %v782
  %vm789 = vmor %vm787, %vm788
  %v790 = vsel %vm789, %v782, %v786
  %v791 = vand.u32 2147483647, %v781
  %vm792 = vcmp.eq.f32.partialorder %v791, 8.507059e+37
  %v793 = vand.u32 %v781, 2147483648
  %v794 = vor.u32 1.1754944e-38, %v793
  %v795 = vsel %vm792, %v794, %v790
  %v796 = vmul.f32 %v771, %v795
  %v797 = vmin.f32 %v796, 1.0
  %v798 = vmax.f32 %v797, -1.0
  %v799 = vmul.f32 %v338, %v338
  %v800 = vmin.f32 16.0, %v799
  %v801 = vmul.f32 %v800, 2.1237322e-06
  %v802 = vadd.f32 %v801, 0.00028619796
  %v803 = vmul.f32 %v800, %v802
  %v804 = vadd.f32 %v803, 0.0036580483
  %v805 = vmul.f32 %v800, %v804
  %v806 = vadd.f32 %v805, 0.05243302
  %v807 = vmul.f32 %v800, %v806
  %v808 = vadd.f32 %v807, 0.18741608
  %v809 = vmul.f32 %v800, %v808
  %v810 = vadd.f32 %v809, 1.1283791
  %v811 = vmul.f32 %v338, %v810
  %v812 = vmul.f32 %v800, 3.8918573e-05
  %v813 = vadd.f32 %v812, 0.001143296
  %v814 = vmul.f32 %v800, %v813
  %v815 = vadd.f32 %v814, 0.014752088
  %v816 = vmul.f32 %v800, %v815
  %v817 = vadd.f32 %v816, 0.112945676
  %v818 = vmul.f32 %v800, %v817
  %v819 = vadd.f32 %v818, 0.4994258
  %v820 = vmul.f32 %v800, %v819
  %v821 = vadd.f32 %v820, 1.0
  %v822 = vrcp.pop %v821
  %v823 = vmul.f32 %v821, %v822
  %v824 = vsub.f32 1.0, %v823
  %v825 = vmul.f32 %v822, %v824
  %v826 = vadd.f32 %v822, %v825
  %vm827 = vweird.f32 %v821
  %vm828 = vweird.f32 %v822
  %vm829 = vmor %vm827, %vm828
  %v830 = vsel %vm829, %v822, %v826
  %v831 = vand.u32 2147483647, %v821
  %vm832 = vcmp.eq.f32.partialorder %v831, 8.507059e+37
  %v833 = vand.u32 %v821, 2147483648
  %v834 = vor.u32 1.1754944e-38, %v833
  %v835 = vsel %vm832, %v834, %v830
  %v836 = vmul.f32 %v811, %v835
  %v837 = vmin.f32 %v836, 1.0
  %v838 = vmax.f32 %v837, -1.0
  %v839 = vmul.f32 %v339, %v339
  %v840 = vmin.f32 16.0, %v839
  %v841 = vmul.f32 %v840, 2.1237322e-06
  %v842 = vadd.f32 %v841, 0.00028619796
  %v843 = vmul.f32 %v840, %v842
  %v844 = vadd.f32 %v843, 0.0036580483
  %v845 = vmul.f32 %v840, %v844
  %v846 = vadd.f32 %v845, 0.05243302
  %v847 = vmul.f32 %v840, %v846
  %v848 = vadd.f32 %v847, 0.18741608
  %v849 = vmul.f32 %v840, %v848
  %v850 = vadd.f32 %v849, 1.1283791
  %v851 = vmul.f32 %v339, %v850
  %v852 = vmul.f32 %v840, 3.8918573e-05
  %v853 = vadd.f32 %v852, 0.001143296
  %v854 = vmul.f32 %v840, %v853
  %v855 = vadd.f32 %v854, 0.014752088
  %v856 = vmul.f32 %v840, %v855
  %v857 = vadd.f32 %v856, 0.112945676
  %v858 = vmul.f32 %v840, %v857
  %v859 = vadd.f32 %v858, 0.4994258
  %v860 = vmul.f32 %v840, %v859
  %v861 = vadd.f32 %v860, 1.0
  %v862 = vrcp.pop %v861
  %v863 = vmul.f32 %v861, %v862
  %v864 = vsub.f32 1.0, %v863
  %v865 = vmul.f32 %v862, %v864
  %v866 = vadd.f32 %v862, %v865
  %vm867 = vweird.f32 %v861
  %vm868 = vweird.f32 %v862
  %vm869 = vmor %vm867, %vm868
  %v870 = vsel %vm869, %v862, %v866
  %v871 = vand.u32 2147483647, %v861
  %vm872 = vcmp.eq.f32.partialorder %v871, 8.507059e+37
  %v873 = vand.u32 %v861, 2147483648
  %v874 = vor.u32 1.1754944e-38, %v873
  %v875 = vsel %vm872, %v874, %v870
  %v876 = vmul.f32 %v851, %v875
  %v877 = vmin.f32 %v876, 1.0
  %v878 = vmax.f32 %v877, -1.0
  %v879 = vmul.f32 %v340, %v340
  %v880 = vmin.f32 16.0, %v879
  %v881 = vmul.f32 %v880, 2.1237322e-06
  %v882 = vadd.f32 %v881, 0.00028619796
  %v883 = vmul.f32 %v880, %v882
  %v884 = vadd.f32 %v883, 0.0036580483
  %v885 = vmul.f32 %v880, %v884
  %v886 = vadd.f32 %v885, 0.05243302
  %v887 = vmul.f32 %v880, %v886
  %v888 = vadd.f32 %v887, 0.18741608
  %v889 = vmul.f32 %v880, %v888
  %v890 = vadd.f32 %v889, 1.1283791
  %v891 = vmul.f32 %v340, %v890
  %v892 = vmul.f32 %v880, 3.8918573e-05
  %v893 = vadd.f32 %v892, 0.001143296
  %v894 = vmul.f32 %v880, %v893
  %v895 = vadd.f32 %v894, 0.014752088
  %v896 = vmul.f32 %v880, %v895
  %v897 = vadd.f32 %v896, 0.112945676
  %v898 = vmul.f32 %v880, %v897
  %v899 = vadd.f32 %v898, 0.4994258
  %v900 = vmul.f32 %v880, %v899
  %v901 = vadd.f32 %v900, 1.0
  %v902 = vrcp.pop %v901
  %v903 = vmul.f32 %v901, %v902
  %v904 = vsub.f32 1.0, %v903
  %v905 = vmul.f32 %v902, %v904
  %v906 = vadd.f32 %v902, %v905
  %vm907 = vweird.f32 %v901
  %vm908 = vweird.f32 %v902
  %vm909 = vmor %vm907, %vm908
  %v910 = vsel %vm909, %v902, %v906
  %v911 = vand.u32 2147483647, %v901
  %vm912 = vcmp.eq.f32.partialorder %v911, 8.507059e+37
  %v913 = vand.u32 %v901, 2147483648
  %v914 = vor.u32 1.1754944e-38, %v913
  %v915 = vsel %vm912, %v914, %v910
  %v916 = vmul.f32 %v891, %v915
  %v917 = vmin.f32 %v916, 1.0
  %v918 = vmax.f32 %v917, -1.0
  %v919 = vmul.f32 %v341, %v341
  %v920 = vmin.f32 16.0, %v919
  %v921 = vmul.f32 %v920, 2.1237322e-06
  %v922 = vadd.f32 %v921, 0.00028619796
  %v923 = vmul.f32 %v920, %v922
  %v924 = vadd.f32 %v923, 0.0036580483
  %v925 = vmul.f32 %v920, %v924
  %v926 = vadd.f32 %v925, 0.05243302
  %v927 = vmul.f32 %v920, %v926
  %v928 = vadd.f32 %v927, 0.18741608
  %v929 = vmul.f32 %v920, %v928
  %v930 = vadd.f32 %v929, 1.1283791
  %v931 = vmul.f32 %v341, %v930
  %v932 = vmul.f32 %v920, 3.8918573e-05
  %v933 = vadd.f32 %v932, 0.001143296
  %v934 = vmul.f32 %v920, %v933
  %v935 = vadd.f32 %v934, 0.014752088
  %v936 = vmul.f32 %v920, %v935
  %v937 = vadd.f32 %v936, 0.112945676
  %v938 = vmul.f32 %v920, %v937
  %v939 = vadd.f32 %v938, 0.4994258
  %v940 = vmul.f32 %v920, %v939
  %v941 = vadd.f32 %v940, 1.0
  %v942 = vrcp.pop %v941
  %v943 = vmul.f32 %v941, %v942
  %v944 = vsub.f32 1.0, %v943
  %v945 = vmul.f32 %v942, %v944
  %v946 = vadd.f32 %v942, %v945
  %vm947 = vweird.f32 %v941
  %vm948 = vweird.f32 %v942
  %vm949 = vmor %vm947, %vm948
  %v950 = vsel %vm949, %v942, %v946
  %v951 = vand.u32 2147483647, %v941
  %vm952 = vcmp.eq.f32.partialorder %v951, 8.507059e+37
  %v953 = vand.u32 %v941, 2147483648
  %v954 = vor.u32 1.1754944e-38, %v953
  %v955 = vsel %vm952, %v954, %v950
  %v956 = vmul.f32 %v931, %v955
  %v957 = vmin.f32 %v956, 1.0
  %v958 = vmax.f32 %v957, -1.0
  %v959 = vmul.f32 %v342, %v342
  %v960 = vmin.f32 16.0, %v959
  %v961 = vmul.f32 %v960, 2.1237322e-06
  %v962 = vadd.f32 %v961, 0.00028619796
  %v963 = vmul.f32 %v960, %v962
  %v964 = vadd.f32 %v963, 0.0036580483
  %v965 = vmul.f32 %v960, %v964
  %v966 = vadd.f32 %v965, 0.05243302
  %v967 = vmul.f32 %v960, %v966
  %v968 = vadd.f32 %v967, 0.18741608
  %v969 = vmul.f32 %v960, %v968
  %v970 = vadd.f32 %v969, 1.1283791
  %v971 = vmul.f32 %v342, %v970
  %v972 = vmul.f32 %v960, 3.8918573e-05
  %v973 = vadd.f32 %v972, 0.001143296
  %v974 = vmul.f32 %v960, %v973
  %v975 = vadd.f32 %v974, 0.014752088
  %v976 = vmul.f32 %v960, %v975
  %v977 = vadd.f32 %v976, 0.112945676
  %v978 = vmul.f32 %v960, %v977
  %v979 = vadd.f32 %v978, 0.4994258
  %v980 = vmul.f32 %v960, %v979
  %v981 = vadd.f32 %v980, 1.0
  %v982 = vrcp.pop %v981
  %v983 = vmul.f32 %v981, %v982
  %v984 = vsub.f32 1.0, %v983
  %v985 = vmul.f32 %v982, %v984
  %v986 = vadd.f32 %v982, %v985
  %vm987 = vweird.f32 %v981
  %vm988 = vweird.f32 %v982
  %vm989 = vmor %vm987, %vm988
  %v990 = vsel %vm989, %v982, %v986
  %v991 = vand.u32 2147483647, %v981
  %vm992 = vcmp.eq.f32.partialorder %v991, 8.507059e+37
  %v993 = vand.u32 %v981, 2147483648
  %v994 = vor.u32 1.1754944e-38, %v993
  %v995 = vsel %vm992, %v994, %v990
  %v996 = vmul.f32 %v971, %v995
  %v997 = vmin.f32 %v996, 1.0
  %v998 = vmax.f32 %v997, -1.0
  %v999 = vmul.f32 %v343, %v343
  %v1000 = vmin.f32 16.0, %v999
  %v1001 = vmul.f32 %v1000, 2.1237322e-06
  %v1002 = vadd.f32 %v1001, 0.00028619796
  %v1003 = vmul.f32 %v1000, %v1002
  %v1004 = vadd.f32 %v1003, 0.0036580483
  %v1005 = vmul.f32 %v1000, %v1004
  %v1006 = vadd.f32 %v1005, 0.05243302
  %v1007 = vmul.f32 %v1000, %v1006
  %v1008 = vadd.f32 %v1007, 0.18741608
  %v1009 = vmul.f32 %v1000, %v1008
  %v1010 = vadd.f32 %v1009, 1.1283791
  %v1011 = vmul.f32 %v343, %v1010
  %v1012 = vmul.f32 %v1000, 3.8918573e-05
  %v1013 = vadd.f32 %v1012, 0.001143296
  %v1014 = vmul.f32 %v1000, %v1013
  %v1015 = vadd.f32 %v1014, 0.014752088
  %v1016 = vmul.f32 %v1000, %v1015
  %v1017 = vadd.f32 %v1016, 0.112945676
  %v1018 = vmul.f32 %v1000, %v1017
  %v1019 = vadd.f32 %v1018, 0.4994258
  %v1020 = vmul.f32 %v1000, %v1019
  %v1021 = vadd.f32 %v1020, 1.0
  %v1022 = vrcp.pop %v1021
  %v1023 = vmul.f32 %v1021, %v1022
  %v1024 = vsub.f32 1.0, %v1023
  %v1025 = vmul.f32 %v1022, %v1024
  %v1026 = vadd.f32 %v1022, %v1025
  %vm1027 = vweird.f32 %v1021
  %vm1028 = vweird.f32 %v1022
  %vm1029 = vmor %vm1027, %vm1028
  %v1030 = vsel %vm1029, %v1022, %v1026
  %v1031 = vand.u32 2147483647, %v1021
  %vm1032 = vcmp.eq.f32.partialorder %v1031, 8.507059e+37
  %v1033 = vand.u32 %v1021, 2147483648
  %v1034 = vor.u32 1.1754944e-38, %v1033
  %v1035 = vsel %vm1032, %v1034, %v1030
  %v1036 = vmul.f32 %v1011, %v1035
  %v1037 = vmin.f32 %v1036, 1.0
  %v1038 = vmax.f32 %v1037, -1.0
  %v1039 = vmul.f32 %v344, %v344
  %v1040 = vmin.f32 16.0, %v1039
  %v1041 = vmul.f32 %v1040, 2.1237322e-06
  %v1042 = vadd.f32 %v1041, 0.00028619796
  %v1043 = vmul.f32 %v1040, %v1042
  %v1044 = vadd.f32 %v1043, 0.0036580483
  %v1045 = vmul.f32 %v1040, %v1044
  %v1046 = vadd.f32 %v1045, 0.05243302
  %v1047 = vmul.f32 %v1040, %v1046
  %v1048 = vadd.f32 %v1047, 0.18741608
  %v1049 = vmul.f32 %v1040, %v1048
  %v1050 = vadd.f32 %v1049, 1.1283791
  %v1051 = vmul.f32 %v344, %v1050
  %v1052 = vmul.f32 %v1040, 3.8918573e-05
  %v1053 = vadd.f32 %v1052, 0.001143296
  %v1054 = vmul.f32 %v1040, %v1053
  %v1055 = vadd.f32 %v1054, 0.014752088
  %v1056 = vmul.f32 %v1040, %v1055
  %v1057 = vadd.f32 %v1056, 0.112945676
  %v1058 = vmul.f32 %v1040, %v1057
  %v1059 = vadd.f32 %v1058, 0.4994258
  %v1060 = vmul.f32 %v1040, %v1059
  %v1061 = vadd.f32 %v1060, 1.0
  %v1062 = vrcp.pop %v1061
  %v1063 = vmul.f32 %v1061, %v1062
  %v1064 = vsub.f32 1.0, %v1063
  %v1065 = vmul.f32 %v1062, %v1064
  %v1066 = vadd.f32 %v1062, %v1065
  %vm1067 = vweird.f32 %v1061
  %vm1068 = vweird.f32 %v1062
  %vm1069 = vmor %vm1067, %vm1068
  %v1070 = vsel %vm1069, %v1062, %v1066
  %v1071 = vand.u32 2147483647, %v1061
  %vm1072 = vcmp.eq.f32.partialorder %v1071, 8.507059e+37
  %v1073 = vand.u32 %v1061, 2147483648
  %v1074 = vor.u32 1.1754944e-38, %v1073
  %v1075 = vsel %vm1072, %v1074, %v1070
  %v1076 = vmul.f32 %v1051, %v1075
  %v1077 = vmin.f32 %v1076, 1.0
  %v1078 = vmax.f32 %v1077, -1.0
  %v1079 = vmul.f32 %v345, %v345
  %v1080 = vmin.f32 16.0, %v1079
  %v1081 = vmul.f32 %v1080, 2.1237322e-06
  %v1082 = vadd.f32 %v1081, 0.00028619796
  %v1083 = vmul.f32 %v1080, %v1082
  %v1084 = vadd.f32 %v1083, 0.0036580483
  %v1085 = vmul.f32 %v1080, %v1084
  %v1086 = vadd.f32 %v1085, 0.05243302
  %v1087 = vmul.f32 %v1080, %v1086
  %v1088 = vadd.f32 %v1087, 0.18741608
  %v1089 = vmul.f32 %v1080, %v1088
  %v1090 = vadd.f32 %v1089, 1.1283791
  %v1091 = vmul.f32 %v345, %v1090
  %v1092 = vmul.f32 %v1080, 3.8918573e-05
  %v1093 = vadd.f32 %v1092, 0.001143296
  %v1094 = vmul.f32 %v1080, %v1093
  %v1095 = vadd.f32 %v1094, 0.014752088
  %v1096 = vmul.f32 %v1080, %v1095
  %v1097 = vadd.f32 %v1096, 0.112945676
  %v1098 = vmul.f32 %v1080, %v1097
  %v1099 = vadd.f32 %v1098, 0.4994258
  %v1100 = vmul.f32 %v1080, %v1099
  %v1101 = vadd.f32 %v1100, 1.0
  %v1102 = vrcp.pop %v1101
  %v1103 = vmul.f32 %v1101, %v1102
  %v1104 = vsub.f32 1.0, %v1103
  %v1105 = vmul.f32 %v1102, %v1104
  %v1106 = vadd.f32 %v1102, %v1105
  %vm1107 = vweird.f32 %v1101
  %vm1108 = vweird.f32 %v1102
  %vm1109 = vmor %vm1107, %vm1108
  %v1110 = vsel %vm1109, %v1102, %v1106
  %v1111 = vand.u32 2147483647, %v1101
  %vm1112 = vcmp.eq.f32.partialorder %v1111, 8.507059e+37
  %v1113 = vand.u32 %v1101, 2147483648
  %v1114 = vor.u32 1.1754944e-38, %v1113
  %v1115 = vsel %vm1112, %v1114, %v1110
  %v1116 = vmul.f32 %v1091, %v1115
  %v1117 = vmin.f32 %v1116, 1.0
  %v1118 = vmax.f32 %v1117, -1.0
  %v1119 = vmul.f32 %v346, %v346
  %v1120 = vmin.f32 16.0, %v1119
  %v1121 = vmul.f32 %v1120, 2.1237322e-06
  %v1122 = vadd.f32 %v1121, 0.00028619796
  %v1123 = vmul.f32 %v1120, %v1122
  %v1124 = vadd.f32 %v1123, 0.0036580483
  %v1125 = vmul.f32 %v1120, %v1124
  %v1126 = vadd.f32 %v1125, 0.05243302
  %v1127 = vmul.f32 %v1120, %v1126
  %v1128 = vadd.f32 %v1127, 0.18741608
  %v1129 = vmul.f32 %v1120, %v1128
  %v1130 = vadd.f32 %v1129, 1.1283791
  %v1131 = vmul.f32 %v346, %v1130
  %v1132 = vmul.f32 %v1120, 3.8918573e-05
  %v1133 = vadd.f32 %v1132, 0.001143296
  %v1134 = vmul.f32 %v1120, %v1133
  %v1135 = vadd.f32 %v1134, 0.014752088
  %v1136 = vmul.f32 %v1120, %v1135
  %v1137 = vadd.f32 %v1136, 0.112945676
  %v1138 = vmul.f32 %v1120, %v1137
  %v1139 = vadd.f32 %v1138, 0.4994258
  %v1140 = vmul.f32 %v1120, %v1139
  %v1141 = vadd.f32 %v1140, 1.0
  %v1142 = vrcp.pop %v1141
  %v1143 = vmul.f32 %v1141, %v1142
  %v1144 = vsub.f32 1.0, %v1143
  %v1145 = vmul.f32 %v1142, %v1144
  %v1146 = vadd.f32 %v1142, %v1145
  %vm1147 = vweird.f32 %v1141
  %vm1148 = vweird.f32 %v1142
  %vm1149 = vmor %vm1147, %vm1148
  %v1150 = vsel %vm1149, %v1142, %v1146
  %v1151 = vand.u32 2147483647, %v1141
  %vm1152 = vcmp.eq.f32.partialorder %v1151, 8.507059e+37
  %v1153 = vand.u32 %v1141, 2147483648
  %v1154 = vor.u32 1.1754944e-38, %v1153
  %v1155 = vsel %vm1152, %v1154, %v1150
  %v1156 = vmul.f32 %v1131, %v1155
  %v1157 = vmin.f32 %v1156, 1.0
  %v1158 = vmax.f32 %v1157, -1.0
  %v1159 = vmul.f32 %v347, %v347
  %v1160 = vmin.f32 16.0, %v1159
  %v1161 = vmul.f32 %v1160, 2.1237322e-06
  %v1162 = vadd.f32 %v1161, 0.00028619796
  %v1163 = vmul.f32 %v1160, %v1162
  %v1164 = vadd.f32 %v1163, 0.0036580483
  %v1165 = vmul.f32 %v1160, %v1164
  %v1166 = vadd.f32 %v1165, 0.05243302
  %v1167 = vmul.f32 %v1160, %v1166
  %v1168 = vadd.f32 %v1167, 0.18741608
  %v1169 = vmul.f32 %v1160, %v1168
  %v1170 = vadd.f32 %v1169, 1.1283791
  %v1171 = vmul.f32 %v347, %v1170
  %v1172 = vmul.f32 %v1160, 3.8918573e-05
  %v1173 = vadd.f32 %v1172, 0.001143296
  %v1174 = vmul.f32 %v1160, %v1173
  %v1175 = vadd.f32 %v1174, 0.014752088
  %v1176 = vmul.f32 %v1160, %v1175
  %v1177 = vadd.f32 %v1176, 0.112945676
  %v1178 = vmul.f32 %v1160, %v1177
  %v1179 = vadd.f32 %v1178, 0.4994258
  %v1180 = vmul.f32 %v1160, %v1179
  %v1181 = vadd.f32 %v1180, 1.0
  %v1182 = vrcp.pop %v1181
  %v1183 = vmul.f32 %v1181, %v1182
  %v1184 = vsub.f32 1.0, %v1183
  %v1185 = vmul.f32 %v1182, %v1184
  %v1186 = vadd.f32 %v1182, %v1185
  %vm1187 = vweird.f32 %v1181
  %vm1188 = vweird.f32 %v1182
  %vm1189 = vmor %vm1187, %vm1188
  %v1190 = vsel %vm1189, %v1182, %v1186
  %v1191 = vand.u32 2147483647, %v1181
  %vm1192 = vcmp.eq.f32.partialorder %v1191, 8.507059e+37
  %v1193 = vand.u32 %v1181, 2147483648
  %v1194 = vor.u32 1.1754944e-38, %v1193
  %v1195 = vsel %vm1192, %v1194, %v1190
  %v1196 = vmul.f32 %v1171, %v1195
  %v1197 = vmin.f32 %v1196, 1.0
  %v1198 = vmax.f32 %v1197, -1.0
  %v1199 = vmul.f32 %v348, %v348
  %v1200 = vmin.f32 16.0, %v1199
  %v1201 = vmul.f32 %v1200, 2.1237322e-06
  %v1202 = vadd.f32 %v1201, 0.00028619796
  %v1203 = vmul.f32 %v1200, %v1202
  %v1204 = vadd.f32 %v1203, 0.0036580483
  %v1205 = vmul.f32 %v1200, %v1204
  %v1206 = vadd.f32 %v1205, 0.05243302
  %v1207 = vmul.f32 %v1200, %v1206
  %v1208 = vadd.f32 %v1207, 0.18741608
  %v1209 = vmul.f32 %v1200, %v1208
  %v1210 = vadd.f32 %v1209, 1.1283791
  %v1211 = vmul.f32 %v348, %v1210
  %v1212 = vmul.f32 %v1200, 3.8918573e-05
  %v1213 = vadd.f32 %v1212, 0.001143296
  %v1214 = vmul.f32 %v1200, %v1213
  %v1215 = vadd.f32 %v1214, 0.014752088
  %v1216 = vmul.f32 %v1200, %v1215
  %v1217 = vadd.f32 %v1216, 0.112945676
  %v1218 = vmul.f32 %v1200, %v1217
  %v1219 = vadd.f32 %v1218, 0.4994258
  %v1220 = vmul.f32 %v1200, %v1219
  %v1221 = vadd.f32 %v1220, 1.0
  %v1222 = vrcp.pop %v1221
  %v1223 = vmul.f32 %v1221, %v1222
  %v1224 = vsub.f32 1.0, %v1223
  %v1225 = vmul.f32 %v1222, %v1224
  %v1226 = vadd.f32 %v1222, %v1225
  %vm1227 = vweird.f32 %v1221
  %vm1228 = vweird.f32 %v1222
  %vm1229 = vmor %vm1227, %vm1228
  %v1230 = vsel %vm1229, %v1222, %v1226
  %v1231 = vand.u32 2147483647, %v1221
  %vm1232 = vcmp.eq.f32.partialorder %v1231, 8.507059e+37
  %v1233 = vand.u32 %v1221, 2147483648
  %v1234 = vor.u32 1.1754944e-38, %v1233
  %v1235 = vsel %vm1232, %v1234, %v1230
  %v1236 = vmul.f32 %v1211, %v1235
  %v1237 = vmin.f32 %v1236, 1.0
  %v1238 = vmax.f32 %v1237, -1.0
  %v1239 = vmul.f32 %v349, %v349
  %v1240 = vmin.f32 16.0, %v1239
  %v1241 = vmul.f32 %v1240, 2.1237322e-06
  %v1242 = vadd.f32 %v1241, 0.00028619796
  %v1243 = vmul.f32 %v1240, %v1242
  %v1244 = vadd.f32 %v1243, 0.0036580483
  %v1245 = vmul.f32 %v1240, %v1244
  %v1246 = vadd.f32 %v1245, 0.05243302
  %v1247 = vmul.f32 %v1240, %v1246
  %v1248 = vadd.f32 %v1247, 0.18741608
  %v1249 = vmul.f32 %v1240, %v1248
  %v1250 = vadd.f32 %v1249, 1.1283791
  %v1251 = vmul.f32 %v349, %v1250
  %v1252 = vmul.f32 %v1240, 3.8918573e-05
  %v1253 = vadd.f32 %v1252, 0.001143296
  %v1254 = vmul.f32 %v1240, %v1253
  %v1255 = vadd.f32 %v1254, 0.014752088
  %v1256 = vmul.f32 %v1240, %v1255
  %v1257 = vadd.f32 %v1256, 0.112945676
  %v1258 = vmul.f32 %v1240, %v1257
  %v1259 = vadd.f32 %v1258, 0.4994258
  %v1260 = vmul.f32 %v1240, %v1259
  %v1261 = vadd.f32 %v1260, 1.0
  %v1262 = vrcp.pop %v1261
  %v1263 = vmul.f32 %v1261, %v1262
  %v1264 = vsub.f32 1.0, %v1263
  %v1265 = vmul.f32 %v1262, %v1264
  %v1266 = vadd.f32 %v1262, %v1265
  %vm1267 = vweird.f32 %v1261
  %vm1268 = vweird.f32 %v1262
  %vm1269 = vmor %vm1267, %vm1268
  %v1270 = vsel %vm1269, %v1262, %v1266
  %v1271 = vand.u32 2147483647, %v1261
  %vm1272 = vcmp.eq.f32.partialorder %v1271, 8.507059e+37
  %v1273 = vand.u32 %v1261, 2147483648
  %v1274 = vor.u32 1.1754944e-38, %v1273
  %v1275 = vsel %vm1272, %v1274, %v1270
  %v1276 = vmul.f32 %v1251, %v1275
  %v1277 = vmin.f32 %v1276, 1.0
  %v1278 = vmax.f32 %v1277, -1.0
  %v1279 = vmul.f32 %v350, %v350
  %v1280 = vmin.f32 16.0, %v1279
  %v1281 = vmul.f32 %v1280, 2.1237322e-06
  %v1282 = vadd.f32 %v1281, 0.00028619796
  %v1283 = vmul.f32 %v1280, %v1282
  %v1284 = vadd.f32 %v1283, 0.0036580483
  %v1285 = vmul.f32 %v1280, %v1284
  %v1286 = vadd.f32 %v1285, 0.05243302
  %v1287 = vmul.f32 %v1280, %v1286
  %v1288 = vadd.f32 %v1287, 0.18741608
  %v1289 = vmul.f32 %v1280, %v1288
  %v1290 = vadd.f32 %v1289, 1.1283791
  %v1291 = vmul.f32 %v350, %v1290
  %v1292 = vmul.f32 %v1280, 3.8918573e-05
  %v1293 = vadd.f32 %v1292, 0.001143296
  %v1294 = vmul.f32 %v1280, %v1293
  %v1295 = vadd.f32 %v1294, 0.014752088
  %v1296 = vmul.f32 %v1280, %v1295
  %v1297 = vadd.f32 %v1296, 0.112945676
  %v1298 = vmul.f32 %v1280, %v1297
  %v1299 = vadd.f32 %v1298, 0.4994258
  %v1300 = vmul.f32 %v1280, %v1299
  %v1301 = vadd.f32 %v1300, 1.0
  %v1302 = vrcp.pop %v1301
  %v1303 = vmul.f32 %v1301, %v1302
  %v1304 = vsub.f32 1.0, %v1303
  %v1305 = vmul.f32 %v1302, %v1304
  %v1306 = vadd.f32 %v1302, %v1305
  %vm1307 = vweird.f32 %v1301
  %vm1308 = vweird.f32 %v1302
  %vm1309 = vmor %vm1307, %vm1308
  %v1310 = vsel %vm1309, %v1302, %v1306
  %v1311 = vand.u32 2147483647, %v1301
  %vm1312 = vcmp.eq.f32.partialorder %v1311, 8.507059e+37
  %v1313 = vand.u32 %v1301, 2147483648
  %v1314 = vor.u32 1.1754944e-38, %v1313
  %v1315 = vsel %vm1312, %v1314, %v1310
  %v1316 = vmul.f32 %v1291, %v1315
  %v1317 = vmin.f32 %v1316, 1.0
  %v1318 = vmax.f32 %v1317, -1.0
  %v1319 = vmul.f32 %v351, %v351
  %v1320 = vmin.f32 16.0, %v1319
  %v1321 = vmul.f32 %v1320, 2.1237322e-06
  %v1322 = vadd.f32 %v1321, 0.00028619796
  %v1323 = vmul.f32 %v1320, %v1322
  %v1324 = vadd.f32 %v1323, 0.0036580483
  %v1325 = vmul.f32 %v1320, %v1324
  %v1326 = vadd.f32 %v1325, 0.05243302
  %v1327 = vmul.f32 %v1320, %v1326
  %v1328 = vadd.f32 %v1327, 0.18741608
  %v1329 = vmul.f32 %v1320, %v1328
  %v1330 = vadd.f32 %v1329, 1.1283791
  %v1331 = vmul.f32 %v351, %v1330
  %v1332 = vmul.f32 %v1320, 3.8918573e-05
  %v1333 = vadd.f32 %v1332, 0.001143296
  %v1334 = vmul.f32 %v1320, %v1333
  %v1335 = vadd.f32 %v1334, 0.014752088
  %v1336 = vmul.f32 %v1320, %v1335
  %v1337 = vadd.f32 %v1336, 0.112945676
  %v1338 = vmul.f32 %v1320, %v1337
  %v1339 = vadd.f32 %v1338, 0.4994258
  %v1340 = vmul.f32 %v1320, %v1339
  %v1341 = vadd.f32 %v1340, 1.0
  %v1342 = vrcp.pop %v1341
  %v1343 = vmul.f32 %v1341, %v1342
  %v1344 = vsub.f32 1.0, %v1343
  %v1345 = vmul.f32 %v1342, %v1344
  %v1346 = vadd.f32 %v1342, %v1345
  %vm1347 = vweird.f32 %v1341
  %vm1348 = vweird.f32 %v1342
  %vm1349 = vmor %vm1347, %vm1348
  %v1350 = vsel %vm1349, %v1342, %v1346
  %v1351 = vand.u32 2147483647, %v1341
  %vm1352 = vcmp.eq.f32.partialorder %v1351, 8.507059e+37
  %v1353 = vand.u32 %v1341, 2147483648
  %v1354 = vor.u32 1.1754944e-38, %v1353
  %v1355 = vsel %vm1352, %v1354, %v1350
  %v1356 = vmul.f32 %v1331, %v1355
  %v1357 = vmin.f32 %v1356, 1.0
  %v1358 = vmax.f32 %v1357, -1.0
  %v1359 = vmul.f32 %v352, %v352
  %v1360 = vmin.f32 16.0, %v1359
  %v1361 = vmul.f32 %v1360, 2.1237322e-06
  %v1362 = vadd.f32 %v1361, 0.00028619796
  %v1363 = vmul.f32 %v1360, %v1362
  %v1364 = vadd.f32 %v1363, 0.0036580483
  %v1365 = vmul.f32 %v1360, %v1364
  %v1366 = vadd.f32 %v1365, 0.05243302
  %v1367 = vmul.f32 %v1360, %v1366
  %v1368 = vadd.f32 %v1367, 0.18741608
  %v1369 = vmul.f32 %v1360, %v1368
  %v1370 = vadd.f32 %v1369, 1.1283791
  %v1371 = vmul.f32 %v352, %v1370
  %v1372 = vmul.f32 %v1360, 3.8918573e-05
  %v1373 = vadd.f32 %v1372, 0.001143296
  %v1374 = vmul.f32 %v1360, %v1373
  %v1375 = vadd.f32 %v1374, 0.014752088
  %v1376 = vmul.f32 %v1360, %v1375
  %v1377 = vadd.f32 %v1376, 0.112945676
  %v1378 = vmul.f32 %v1360, %v1377
  %v1379 = vadd.f32 %v1378, 0.4994258
  %v1380 = vmul.f32 %v1360, %v1379
  %v1381 = vadd.f32 %v1380, 1.0
  %v1382 = vrcp.pop %v1381
  %v1383 = vmul.f32 %v1381, %v1382
  %v1384 = vsub.f32 1.0, %v1383
  %v1385 = vmul.f32 %v1382, %v1384
  %v1386 = vadd.f32 %v1382, %v1385
  %vm1387 = vweird.f32 %v1381
  %vm1388 = vweird.f32 %v1382
  %vm1389 = vmor %vm1387, %vm1388
  %v1390 = vsel %vm1389, %v1382, %v1386
  %v1391 = vand.u32 2147483647, %v1381
  %vm1392 = vcmp.eq.f32.partialorder %v1391, 8.507059e+37
  %v1393 = vand.u32 %v1381, 2147483648
  %v1394 = vor.u32 1.1754944e-38, %v1393
  %v1395 = vsel %vm1392, %v1394, %v1390
  %v1396 = vmul.f32 %v1371, %v1395
  %v1397 = vmin.f32 %v1396, 1.0
  %v1398 = vmax.f32 %v1397, -1.0
  %v1399 = vmul.f32 %v353, %v353
  %v1400 = vmin.f32 16.0, %v1399
  %v1401 = vmul.f32 %v1400, 2.1237322e-06
  %v1402 = vadd.f32 %v1401, 0.00028619796
  %v1403 = vmul.f32 %v1400, %v1402
  %v1404 = vadd.f32 %v1403, 0.0036580483
  %v1405 = vmul.f32 %v1400, %v1404
  %v1406 = vadd.f32 %v1405, 0.05243302
  %v1407 = vmul.f32 %v1400, %v1406
  %v1408 = vadd.f32 %v1407, 0.18741608
  %v1409 = vmul.f32 %v1400, %v1408
  %v1410 = vadd.f32 %v1409, 1.1283791
  %v1411 = vmul.f32 %v353, %v1410
  %v1412 = vmul.f32 %v1400, 3.8918573e-05
  %v1413 = vadd.f32 %v1412, 0.001143296
  %v1414 = vmul.f32 %v1400, %v1413
  %v1415 = vadd.f32 %v1414, 0.014752088
  %v1416 = vmul.f32 %v1400, %v1415
  %v1417 = vadd.f32 %v1416, 0.112945676
  %v1418 = vmul.f32 %v1400, %v1417
  %v1419 = vadd.f32 %v1418, 0.4994258
  %v1420 = vmul.f32 %v1400, %v1419
  %v1421 = vadd.f32 %v1420, 1.0
  %v1422 = vrcp.pop %v1421
  %v1423 = vmul.f32 %v1421, %v1422
  %v1424 = vsub.f32 1.0, %v1423
  %v1425 = vmul.f32 %v1422, %v1424
  %v1426 = vadd.f32 %v1422, %v1425
  %vm1427 = vweird.f32 %v1421
  %vm1428 = vweird.f32 %v1422
  %vm1429 = vmor %vm1427, %vm1428
  %v1430 = vsel %vm1429, %v1422, %v1426
  %v1431 = vand.u32 2147483647, %v1421
  %vm1432 = vcmp.eq.f32.partialorder %v1431, 8.507059e+37
  %v1433 = vand.u32 %v1421, 2147483648
  %v1434 = vor.u32 1.1754944e-38, %v1433
  %v1435 = vsel %vm1432, %v1434, %v1430
  %v1436 = vmul.f32 %v1411, %v1435
  %v1437 = vmin.f32 %v1436, 1.0
  %v1438 = vmax.f32 %v1437, -1.0
  %v1439 = vmul.f32 %v354, %v354
  %v1440 = vmin.f32 16.0, %v1439
  %v1441 = vmul.f32 %v1440, 2.1237322e-06
  %v1442 = vadd.f32 %v1441, 0.00028619796
  %v1443 = vmul.f32 %v1440, %v1442
  %v1444 = vadd.f32 %v1443, 0.0036580483
  %v1445 = vmul.f32 %v1440, %v1444
  %v1446 = vadd.f32 %v1445, 0.05243302
  %v1447 = vmul.f32 %v1440, %v1446
  %v1448 = vadd.f32 %v1447, 0.18741608
  %v1449 = vmul.f32 %v1440, %v1448
  %v1450 = vadd.f32 %v1449, 1.1283791
  %v1451 = vmul.f32 %v354, %v1450
  %v1452 = vmul.f32 %v1440, 3.8918573e-05
  %v1453 = vadd.f32 %v1452, 0.001143296
  %v1454 = vmul.f32 %v1440, %v1453
  %v1455 = vadd.f32 %v1454, 0.014752088
  %v1456 = vmul.f32 %v1440, %v1455
  %v1457 = vadd.f32 %v1456, 0.112945676
  %v1458 = vmul.f32 %v1440, %v1457
  %v1459 = vadd.f32 %v1458, 0.4994258
  %v1460 = vmul.f32 %v1440, %v1459
  %v1461 = vadd.f32 %v1460, 1.0
  %v1462 = vrcp.pop %v1461
  %v1463 = vmul.f32 %v1461, %v1462
  %v1464 = vsub.f32 1.0, %v1463
  %v1465 = vmul.f32 %v1462, %v1464
  %v1466 = vadd.f32 %v1462, %v1465
  %vm1467 = vweird.f32 %v1461
  %vm1468 = vweird.f32 %v1462
  %vm1469 = vmor %vm1467, %vm1468
  %v1470 = vsel %vm1469, %v1462, %v1466
  %v1471 = vand.u32 2147483647, %v1461
  %vm1472 = vcmp.eq.f32.partialorder %v1471, 8.507059e+37
  %v1473 = vand.u32 %v1461, 2147483648
  %v1474 = vor.u32 1.1754944e-38, %v1473
  %v1475 = vsel %vm1472, %v1474, %v1470
  %v1476 = vmul.f32 %v1451, %v1475
  %v1477 = vmin.f32 %v1476, 1.0
  %v1478 = vmax.f32 %v1477, -1.0
  %v1479 = vmul.f32 %v355, %v355
  %v1480 = vmin.f32 16.0, %v1479
  %v1481 = vmul.f32 %v1480, 2.1237322e-06
  %v1482 = vadd.f32 %v1481, 0.00028619796
  %v1483 = vmul.f32 %v1480, %v1482
  %v1484 = vadd.f32 %v1483, 0.0036580483
  %v1485 = vmul.f32 %v1480, %v1484
  %v1486 = vadd.f32 %v1485, 0.05243302
  %v1487 = vmul.f32 %v1480, %v1486
  %v1488 = vadd.f32 %v1487, 0.18741608
  %v1489 = vmul.f32 %v1480, %v1488
  %v1490 = vadd.f32 %v1489, 1.1283791
  %v1491 = vmul.f32 %v355, %v1490
  %v1492 = vmul.f32 %v1480, 3.8918573e-05
  %v1493 = vadd.f32 %v1492, 0.001143296
  %v1494 = vmul.f32 %v1480, %v1493
  %v1495 = vadd.f32 %v1494, 0.014752088
  %v1496 = vmul.f32 %v1480, %v1495
  %v1497 = vadd.f32 %v1496, 0.112945676
  %v1498 = vmul.f32 %v1480, %v1497
  %v1499 = vadd.f32 %v1498, 0.4994258
  %v1500 = vmul.f32 %v1480, %v1499
  %v1501 = vadd.f32 %v1500, 1.0
  %v1502 = vrcp.pop %v1501
  %v1503 = vmul.f32 %v1501, %v1502
  %v1504 = vsub.f32 1.0, %v1503
  %v1505 = vmul.f32 %v1502, %v1504
  %v1506 = vadd.f32 %v1502, %v1505
  %vm1507 = vweird.f32 %v1501
  %vm1508 = vweird.f32 %v1502
  %vm1509 = vmor %vm1507, %vm1508
  %v1510 = vsel %vm1509, %v1502, %v1506
  %v1511 = vand.u32 2147483647, %v1501
  %vm1512 = vcmp.eq.f32.partialorder %v1511, 8.507059e+37
  %v1513 = vand.u32 %v1501, 2147483648
  %v1514 = vor.u32 1.1754944e-38, %v1513
  %v1515 = vsel %vm1512, %v1514, %v1510
  %v1516 = vmul.f32 %v1491, %v1515
  %v1517 = vmin.f32 %v1516, 1.0
  %v1518 = vmax.f32 %v1517, -1.0
  %v1519 = vmul.f32 %v356, %v356
  %v1520 = vmin.f32 16.0, %v1519
  %v1521 = vmul.f32 %v1520, 2.1237322e-06
  %v1522 = vadd.f32 %v1521, 0.00028619796
  %v1523 = vmul.f32 %v1520, %v1522
  %v1524 = vadd.f32 %v1523, 0.0036580483
  %v1525 = vmul.f32 %v1520, %v1524
  %v1526 = vadd.f32 %v1525, 0.05243302
  %v1527 = vmul.f32 %v1520, %v1526
  %v1528 = vadd.f32 %v1527, 0.18741608
  %v1529 = vmul.f32 %v1520, %v1528
  %v1530 = vadd.f32 %v1529, 1.1283791
  %v1531 = vmul.f32 %v356, %v1530
  %v1532 = vmul.f32 %v1520, 3.8918573e-05
  %v1533 = vadd.f32 %v1532, 0.001143296
  %v1534 = vmul.f32 %v1520, %v1533
  %v1535 = vadd.f32 %v1534, 0.014752088
  %v1536 = vmul.f32 %v1520, %v1535
  %v1537 = vadd.f32 %v1536, 0.112945676
  %v1538 = vmul.f32 %v1520, %v1537
  %v1539 = vadd.f32 %v1538, 0.4994258
  %v1540 = vmul.f32 %v1520, %v1539
  %v1541 = vadd.f32 %v1540, 1.0
  %v1542 = vrcp.pop %v1541
  %v1543 = vmul.f32 %v1541, %v1542
  %v1544 = vsub.f32 1.0, %v1543
  %v1545 = vmul.f32 %v1542, %v1544
  %v1546 = vadd.f32 %v1542, %v1545
  %vm1547 = vweird.f32 %v1541
  %vm1548 = vweird.f32 %v1542
  %vm1549 = vmor %vm1547, %vm1548
  %v1550 = vsel %vm1549, %v1542, %v1546
  %v1551 = vand.u32 2147483647, %v1541
  %vm1552 = vcmp.eq.f32.partialorder %v1551, 8.507059e+37
  %v1553 = vand.u32 %v1541, 2147483648
  %v1554 = vor.u32 1.1754944e-38, %v1553
  %v1555 = vsel %vm1552, %v1554, %v1550
  %v1556 = vmul.f32 %v1531, %v1555
  %v1557 = vmin.f32 %v1556, 1.0
  %v1558 = vmax.f32 %v1557, -1.0
  %v1559 = vmul.f32 %v357, %v357
  %v1560 = vmin.f32 16.0, %v1559
  %v1561 = vmul.f32 %v1560, 2.1237322e-06
  %v1562 = vadd.f32 %v1561, 0.00028619796
  %v1563 = vmul.f32 %v1560, %v1562
  %v1564 = vadd.f32 %v1563, 0.0036580483
  %v1565 = vmul.f32 %v1560, %v1564
  %v1566 = vadd.f32 %v1565, 0.05243302
  %v1567 = vmul.f32 %v1560, %v1566
  %v1568 = vadd.f32 %v1567, 0.18741608
  %v1569 = vmul.f32 %v1560, %v1568
  %v1570 = vadd.f32 %v1569, 1.1283791
  %v1571 = vmul.f32 %v357, %v1570
  %v1572 = vmul.f32 %v1560, 3.8918573e-05
  %v1573 = vadd.f32 %v1572, 0.001143296
  %v1574 = vmul.f32 %v1560, %v1573
  %v1575 = vadd.f32 %v1574, 0.014752088
  %v1576 = vmul.f32 %v1560, %v1575
  %v1577 = vadd.f32 %v1576, 0.112945676
  %v1578 = vmul.f32 %v1560, %v1577
  %v1579 = vadd.f32 %v1578, 0.4994258
  %v1580 = vmul.f32 %v1560, %v1579
  %v1581 = vadd.f32 %v1580, 1.0
  %v1582 = vrcp.pop %v1581
  %v1583 = vmul.f32 %v1581, %v1582
  %v1584 = vsub.f32 1.0, %v1583
  %v1585 = vmul.f32 %v1582, %v1584
  %v1586 = vadd.f32 %v1582, %v1585
  %vm1587 = vweird.f32 %v1581
  %vm1588 = vweird.f32 %v1582
  %vm1589 = vmor %vm1587, %vm1588
  %v1590 = vsel %vm1589, %v1582, %v1586
  %v1591 = vand.u32 2147483647, %v1581
  %vm1592 = vcmp.eq.f32.partialorder %v1591, 8.507059e+37
  %v1593 = vand.u32 %v1581, 2147483648
  %v1594 = vor.u32 1.1754944e-38, %v1593
  %v1595 = vsel %vm1592, %v1594, %v1590
  %v1596 = vmul.f32 %v1571, %v1595
  %v1597 = vmin.f32 %v1596, 1.0
  %v1598 = vmax.f32 %v1597, -1.0
  %v1599 = vmul.f32 %v358, %v358
  %v1600 = vmin.f32 16.0, %v1599
  %v1601 = vmul.f32 %v1600, 2.1237322e-06
  %v1602 = vadd.f32 %v1601, 0.00028619796
  %v1603 = vmul.f32 %v1600, %v1602
  %v1604 = vadd.f32 %v1603, 0.0036580483
  %v1605 = vmul.f32 %v1600, %v1604
  %v1606 = vadd.f32 %v1605, 0.05243302
  %v1607 = vmul.f32 %v1600, %v1606
  %v1608 = vadd.f32 %v1607, 0.18741608
  %v1609 = vmul.f32 %v1600, %v1608
  %v1610 = vadd.f32 %v1609, 1.1283791
  %v1611 = vmul.f32 %v358, %v1610
  %v1612 = vmul.f32 %v1600, 3.8918573e-05
  %v1613 = vadd.f32 %v1612, 0.001143296
  %v1614 = vmul.f32 %v1600, %v1613
  %v1615 = vadd.f32 %v1614, 0.014752088
  %v1616 = vmul.f32 %v1600, %v1615
  %v1617 = vadd.f32 %v1616, 0.112945676
  %v1618 = vmul.f32 %v1600, %v1617
  %v1619 = vadd.f32 %v1618, 0.4994258
  %v1620 = vmul.f32 %v1600, %v1619
  %v1621 = vadd.f32 %v1620, 1.0
  %v1622 = vrcp.pop %v1621
  %v1623 = vmul.f32 %v1621, %v1622
  %v1624 = vsub.f32 1.0, %v1623
  %v1625 = vmul.f32 %v1622, %v1624
  %v1626 = vadd.f32 %v1622, %v1625
  %vm1627 = vweird.f32 %v1621
  %vm1628 = vweird.f32 %v1622
  %vm1629 = vmor %vm1627, %vm1628
  %v1630 = vsel %vm1629, %v1622, %v1626
  %v1631 = vand.u32 2147483647, %v1621
  %vm1632 = vcmp.eq.f32.partialorder %v1631, 8.507059e+37
  %v1633 = vand.u32 %v1621, 2147483648
  %v1634 = vor.u32 1.1754944e-38, %v1633
  %v1635 = vsel %vm1632, %v1634, %v1630
  %v1636 = vmul.f32 %v1611, %v1635
  %v1637 = vmin.f32 %v1636, 1.0
  %v1638 = vmax.f32 %v1637, -1.0
  %v1639 = vadd.f32 %v398, 1.0
  %v1640 = vadd.f32 %v438, 1.0
  %v1641 = vadd.f32 %v478, 1.0
  %v1642 = vadd.f32 %v518, 1.0
  %v1643 = vadd.f32 %v558, 1.0
  %v1644 = vadd.f32 %v598, 1.0
  %v1645 = vadd.f32 %v638, 1.0
  %v1646 = vadd.f32 %v678, 1.0
  %v1647 = vadd.f32 %v718, 1.0
  %v1648 = vadd.f32 %v758, 1.0
  %v1649 = vadd.f32 %v798, 1.0
  %v1650 = vadd.f32 %v838, 1.0
  %v1651 = vadd.f32 %v878, 1.0
  %v1652 = vadd.f32 %v918, 1.0
  %v1653 = vadd.f32 %v958, 1.0
  %v1654 = vadd.f32 %v998, 1.0
  %v1655 = vadd.f32 %v1038, 1.0
  %v1656 = vadd.f32 %v1078, 1.0
  %v1657 = vadd.f32 %v1118, 1.0
  %v1658 = vadd.f32 %v1158, 1.0
  %v1659 = vadd.f32 %v1198, 1.0
  %v1660 = vadd.f32 %v1238, 1.0
  %v1661 = vadd.f32 %v1278, 1.0
  %v1662 = vadd.f32 %v1318, 1.0
  %v1663 = vadd.f32 %v1358, 1.0
  %v1664 = vadd.f32 %v1398, 1.0
  %v1665 = vadd.f32 %v1438, 1.0
  %v1666 = vadd.f32 %v1478, 1.0
  %v1667 = vadd.f32 %v1518, 1.0
  %v1668 = vadd.f32 %v1558, 1.0
  %v1669 = vadd.f32 %v1598, 1.0
  %v1670 = vadd.f32 %v1638, 1.0
  %v1671 = vmul.f32 %v295, %v1639
  %v1672 = vmul.f32 %v296, %v1640
  %v1673 = vmul.f32 %v297, %v1641
  %v1674 = vmul.f32 %v298, %v1642
  %v1675 = vmul.f32 %v299, %v1643
  %v1676 = vmul.f32 %v300, %v1644
  %v1677 = vmul.f32 %v301, %v1645
  %v1678 = vmul.f32 %v302, %v1646
  %v1679 = vmul.f32 %v303, %v1647
  %v1680 = vmul.f32 %v304, %v1648
  %v1681 = vmul.f32 %v305, %v1649
  %v1682 = vmul.f32 %v306, %v1650
  %v1683 = vmul.f32 %v307, %v1651
  %v1684 = vmul.f32 %v308, %v1652
  %v1685 = vmul.f32 %v309, %v1653
  %v1686 = vmul.f32 %v310, %v1654
  %v1687 = vmul.f32 %v311, %v1655
  %v1688 = vmul.f32 %v312, %v1656
  %v1689 = vmul.f32 %v313, %v1657
  %v1690 = vmul.f32 %v314, %v1658
  %v1691 = vmul.f32 %v315, %v1659
  %v1692 = vmul.f32 %v316, %v1660
  %v1693 = vmul.f32 %v317, %v1661
  %v1694 = vmul.f32 %v318, %v1662
  %v1695 = vmul.f32 %v319, %v1663
  %v1696 = vmul.f32 %v320, %v1664
  %v1697 = vmul.f32 %v321, %v1665
  %v1698 = vmul.f32 %v322, %v1666
  %v1699 = vmul.f32 %v323, %v1667
  %v1700 = vmul.f32 %v324, %v1668
  %v1701 = vmul.f32 %v325, %v1669
  %v1702 = vmul.f32 %v326, %v1670
  %v1703 = vld [vmem:[%s4] sm:$0xff]
  %v1704 = vld [vmem:[%s4 + $0x8] sm:$0xff]
  %s1705 = sld [smem:[#allocation2]]
  %v1706 = vstv %s1705
  %vm1707 = vcmask 130048
  %v1709 = vsel %vm1707, %v1671, 0
  %v1712 = vsel %vm1707, %v1672, 0
  %v1715 = vsel %vm1707, %v1673, 0
  %v1718 = vsel %vm1707, %v1674, 0
  %v1721 = vsel %vm1707, %v1675, 0
  %v1724 = vsel %vm1707, %v1676, 0
  %v1727 = vsel %vm1707, %v1677, 0
  %v1730 = vsel %vm1707, %v1678, 0
  %v1733 = vsel %vm1707, %v1679, 0
  %v1736 = vsel %vm1707, %v1680, 0
  %v1739 = vsel %vm1707, %v1681, 0
  %v1742 = vsel %vm1707, %v1682, 0
  %v1745 = vsel %vm1707, %v1683, 0
  %v1748 = vsel %vm1707, %v1684, 0
  %v1751 = vsel %vm1707, %v1685, 0
  %v1754 = vsel %vm1707, %v1686, 0
  %v1757 = vsel %vm1707, %v1687, 0
  %v1760 = vsel %vm1707, %v1688, 0
  %v1763 = vsel %vm1707, %v1689, 0
  %v1766 = vsel %vm1707, %v1690, 0
  %v1769 = vsel %vm1707, %v1691, 0
  %v1772 = vsel %vm1707, %v1692, 0
  %v1775 = vsel %vm1707, %v1693, 0
  %v1778 = vsel %vm1707, %v1694, 0
  %v1781 = vsel %vm1707, %v1695, 0
  %v1784 = vsel %vm1707, %v1696, 0
  %v1787 = vsel %vm1707, %v1697, 0
  %v1790 = vsel %vm1707, %v1698, 0
  %v1793 = vsel %vm1707, %v1699, 0
  %v1796 = vsel %vm1707, %v1700, 0
  %v1799 = vsel %vm1707, %v1701, 0
  %v1802 = vsel %vm1707, %v1702, 0
  %1804 = vmatpush.msra.mxu0 0.0
  %1805 = vmatpush.msra.mxu0 0.0
  %1806 = vmatpush.msra.mxu0 0.0
  %1807 = vmatpush.msra.mxu0 0.0
  %1808 = vmatpush.msra.mxu0 0.0
  %1809 = vmatpush.msra.mxu0 0.0
  %1810 = vmatpush.msra.mxu0 0.0
  %1811 = vmatpush.msra.mxu0 0.0
  %1812 = vmatpush.msra.mxu0 0.0
  %1813 = vmatpush.msra.mxu0 0.0
  %1814 = vmatpush.msra.mxu0 0.0
  %1815 = vmatpush.msra.mxu0 0.0
  %1816 = vmatpush.msra.mxu0 0.0
  %1817 = vmatpush.msra.mxu0 0.0
  %1818 = vmatpush.msra.mxu0 %v1704
  %1819 = vmatpush.msra.mxu0 %v1703
  %1820 = vmatmul.f32.gmra.mxu0 %v1709
  %v1821 = vpop.f32.mrf.mxu0
  %v1822 = vadd.f32 %v1706, %v1821
  %1823 = vmatmul.f32.gmra.mxu0 %v1712
  %v1824 = vpop.f32.mrf.mxu0
  %v1825 = vadd.f32 %v1706, %v1824
  %1826 = vmatmul.f32.gmra.mxu0 %v1715
  %v1827 = vpop.f32.mrf.mxu0
  %v1828 = vadd.f32 %v1706, %v1827
  %1829 = vmatmul.f32.gmra.mxu0 %v1718
  %v1830 = vpop.f32.mrf.mxu0
  %v1831 = vadd.f32 %v1706, %v1830
  %1832 = vmatmul.f32.gmra.mxu0 %v1721
  %v1833 = vpop.f32.mrf.mxu0
  %v1834 = vadd.f32 %v1706, %v1833
  %1835 = vmatmul.f32.gmra.mxu0 %v1724
  %v1836 = vpop.f32.mrf.mxu0
  %v1837 = vadd.f32 %v1706, %v1836
  %1838 = vmatmul.f32.gmra.mxu0 %v1727
  %v1839 = vpop.f32.mrf.mxu0
  %v1840 = vadd.f32 %v1706, %v1839
  %1841 = vmatmul.f32.gmra.mxu0 %v1730
  %v1842 = vpop.f32.mrf.mxu0
  %v1843 = vadd.f32 %v1706, %v1842
  %1844 = vmatmul.f32.gmra.mxu0 %v1733
  %v1845 = vpop.f32.mrf.mxu0
  %v1846 = vadd.f32 %v1706, %v1845
  %1847 = vmatmul.f32.gmra.mxu0 %v1736
  %v1848 = vpop.f32.mrf.mxu0
  %v1849 = vadd.f32 %v1706, %v1848
  %1850 = vmatmul.f32.gmra.mxu0 %v1739
  %v1851 = vpop.f32.mrf.mxu0
  %v1852 = vadd.f32 %v1706, %v1851
  %1853 = vmatmul.f32.gmra.mxu0 %v1742
  %v1854 = vpop.f32.mrf.mxu0
  %v1855 = vadd.f32 %v1706, %v1854
  %1856 = vmatmul.f32.gmra.mxu0 %v1745
  %v1857 = vpop.f32.mrf.mxu0
  %v1858 = vadd.f32 %v1706, %v1857
  %1859 = vmatmul.f32.gmra.mxu0 %v1748
  %v1860 = vpop.f32.mrf.mxu0
  %v1861 = vadd.f32 %v1706, %v1860
  %1862 = vmatmul.f32.gmra.mxu0 %v1751
  %v1863 = vpop.f32.mrf.mxu0
  %v1864 = vadd.f32 %v1706, %v1863
  %1865 = vmatmul.f32.gmra.mxu0 %v1754
  %v1866 = vpop.f32.mrf.mxu0
  %v1867 = vadd.f32 %v1706, %v1866
  %1868 = vmatmul.f32.gmra.mxu0 %v1757
  %v1869 = vpop.f32.mrf.mxu0
  %v1870 = vadd.f32 %v1706, %v1869
  %1871 = vmatmul.f32.gmra.mxu0 %v1760
  %v1872 = vpop.f32.mrf.mxu0
  %v1873 = vadd.f32 %v1706, %v1872
  %1874 = vmatmul.f32.gmra.mxu0 %v1763
  %v1875 = vpop.f32.mrf.mxu0
  %v1876 = vadd.f32 %v1706, %v1875
  %1877 = vmatmul.f32.gmra.mxu0 %v1766
  %v1878 = vpop.f32.mrf.mxu0
  %v1879 = vadd.f32 %v1706, %v1878
  %1880 = vmatmul.f32.gmra.mxu0 %v1769
  %v1881 = vpop.f32.mrf.mxu0
  %v1882 = vadd.f32 %v1706, %v1881
  %1883 = vmatmul.f32.gmra.mxu0 %v1772
  %v1884 = vpop.f32.mrf.mxu0
  %v1885 = vadd.f32 %v1706, %v1884
  %1886 = vmatmul.f32.gmra.mxu0 %v1775
  %v1887 = vpop.f32.mrf.mxu0
  %v1888 = vadd.f32 %v1706, %v1887
  %1889 = vmatmul.f32.gmra.mxu0 %v1778
  %v1890 = vpop.f32.mrf.mxu0
  %v1891 = vadd.f32 %v1706, %v1890
  %1892 = vmatmul.f32.gmra.mxu0 %v1781
  %v1893 = vpop.f32.mrf.mxu0
  %v1894 = vadd.f32 %v1706, %v1893
  %1895 = vmatmul.f32.gmra.mxu0 %v1784
  %v1896 = vpop.f32.mrf.mxu0
  %v1897 = vadd.f32 %v1706, %v1896
  %1898 = vmatmul.f32.gmra.mxu0 %v1787
  %v1899 = vpop.f32.mrf.mxu0
  %v1900 = vadd.f32 %v1706, %v1899
  %1901 = vmatmul.f32.gmra.mxu0 %v1790
  %v1902 = vpop.f32.mrf.mxu0
  %v1903 = vadd.f32 %v1706, %v1902
  %1904 = vmatmul.f32.gmra.mxu0 %v1793
  %v1905 = vpop.f32.mrf.mxu0
  %v1906 = vadd.f32 %v1706, %v1905
  %1907 = vmatmul.f32.gmra.mxu0 %v1796
  %v1908 = vpop.f32.mrf.mxu0
  %v1909 = vadd.f32 %v1706, %v1908
  %1910 = vmatmul.f32.gmra.mxu0 %v1799
  %v1911 = vpop.f32.mrf.mxu0
  %v1912 = vadd.f32 %v1706, %v1911
  %1913 = vmatmul.f32.gmra.mxu0 %v1802
  %v1914 = vpop.f32.mrf.mxu0
  %v1915 = vadd.f32 %v1706, %v1914
  %1916 = vdwg.mxu0
  %v1917 = vld [vmem:[%s1] sm:$0xff]
  %v1918 = vld [vmem:[%s1 + $0x8] sm:$0xff]
  %v1919 = vld [vmem:[%s1 + $0x10] sm:$0xff]
  %v1920 = vld [vmem:[%s1 + $0x18] sm:$0xff]
  %v1921 = vld [vmem:[%s1 + $0x20] sm:$0xff]
  %v1922 = vld [vmem:[%s1 + $0x28] sm:$0xff]
  %v1923 = vld [vmem:[%s1 + $0x30] sm:$0xff]
  %v1924 = vld [vmem:[%s1 + $0x38] sm:$0xff]
  %v1925 = vld [vmem:[%s1 + $0x40] sm:$0xff]
  %v1926 = vld [vmem:[%s1 + $0x48] sm:$0xff]
  %v1927 = vld [vmem:[%s1 + $0x50] sm:$0xff]
  %v1928 = vld [vmem:[%s1 + $0x58] sm:$0xff]
  %v1929 = vld [vmem:[%s1 + $0x60] sm:$0xff]
  %v1930 = vld [vmem:[%s1 + $0x68] sm:$0xff]
  %v1931 = vld [vmem:[%s1 + $0x70] sm:$0xff]
  %v1932 = vld [vmem:[%s1 + $0x78] sm:$0xff]
  %v1933 = vld [vmem:[%s1 + $0x80] sm:$0xff]
  %v1934 = vld [vmem:[%s1 + $0x88] sm:$0xff]
  %v1935 = vld [vmem:[%s1 + $0x90] sm:$0xff]
  %v1936 = vld [vmem:[%s1 + $0x98] sm:$0xff]
  %v1937 = vld [vmem:[%s1 + $0xa0] sm:$0xff]
  %v1938 = vld [vmem:[%s1 + $0xa8] sm:$0xff]
  %v1939 = vld [vmem:[%s1 + $0xb0] sm:$0xff]
  %v1940 = vld [vmem:[%s1 + $0xb8] sm:$0xff]
  %v1941 = vld [vmem:[%s1 + $0xc0] sm:$0xff]
  %v1942 = vld [vmem:[%s1 + $0xc8] sm:$0xff]
  %v1943 = vld [vmem:[%s1 + $0xd0] sm:$0xff]
  %v1944 = vld [vmem:[%s1 + $0xd8] sm:$0xff]
  %v1945 = vld [vmem:[%s1 + $0xe0] sm:$0xff]
  %v1946 = vld [vmem:[%s1 + $0xe8] sm:$0xff]
  %v1947 = vld [vmem:[%s1 + $0xf0] sm:$0xff]
  %v1948 = vld [vmem:[%s1 + $0xf8] sm:$0xff]
  %v1949 = vmul.f32 %v1822, %v1917
  %v1950 = vmul.f32 %v1825, %v1918
  %v1951 = vmul.f32 %v1828, %v1919
  %v1952 = vmul.f32 %v1831, %v1920
  %v1953 = vmul.f32 %v1834, %v1921
  %v1954 = vmul.f32 %v1837, %v1922
  %v1955 = vmul.f32 %v1840, %v1923
  %v1956 = vmul.f32 %v1843, %v1924
  %v1957 = vmul.f32 %v1846, %v1925
  %v1958 = vmul.f32 %v1849, %v1926
  %v1959 = vmul.f32 %v1852, %v1927
  %v1960 = vmul.f32 %v1855, %v1928
  %v1961 = vmul.f32 %v1858, %v1929
  %v1962 = vmul.f32 %v1861, %v1930
  %v1963 = vmul.f32 %v1864, %v1931
  %v1964 = vmul.f32 %v1867, %v1932
  %v1965 = vmul.f32 %v1870, %v1933
  %v1966 = vmul.f32 %v1873, %v1934
  %v1967 = vmul.f32 %v1876, %v1935
  %v1968 = vmul.f32 %v1879, %v1936
  %v1969 = vmul.f32 %v1882, %v1937
  %v1970 = vmul.f32 %v1885, %v1938
  %v1971 = vmul.f32 %v1888, %v1939
  %v1972 = vmul.f32 %v1891, %v1940
  %v1973 = vmul.f32 %v1894, %v1941
  %v1974 = vmul.f32 %v1897, %v1942
  %v1975 = vmul.f32 %v1900, %v1943
  %v1976 = vmul.f32 %v1903, %v1944
  %v1977 = vmul.f32 %v1906, %v1945
  %v1978 = vmul.f32 %v1909, %v1946
  %v1979 = vmul.f32 %v1912, %v1947
  %v1980 = vmul.f32 %v1915, %v1948
  %vm1981 = vcmp.eq.f32.partialorder %v1949, 0.0
  %vm1982 = vcmp.eq.f32.partialorder %v1950, 0.0
  %vm1983 = vcmp.eq.f32.partialorder %v1951, 0.0
  %vm1984 = vcmp.eq.f32.partialorder %v1952, 0.0
  %vm1985 = vcmp.eq.f32.partialorder %v1953, 0.0
  %vm1986 = vcmp.eq.f32.partialorder %v1954, 0.0
  %vm1987 = vcmp.eq.f32.partialorder %v1955, 0.0
  %vm1988 = vcmp.eq.f32.partialorder %v1956, 0.0
  %vm1989 = vcmp.eq.f32.partialorder %v1957, 0.0
  %vm1990 = vcmp.eq.f32.partialorder %v1958, 0.0
  %vm1991 = vcmp.eq.f32.partialorder %v1959, 0.0
  %vm1992 = vcmp.eq.f32.partialorder %v1960, 0.0
  %vm1993 = vcmp.eq.f32.partialorder %v1961, 0.0
  %vm1994 = vcmp.eq.f32.partialorder %v1962, 0.0
  %vm1995 = vcmp.eq.f32.partialorder %v1963, 0.0
  %vm1996 = vcmp.eq.f32.partialorder %v1964, 0.0
  %vm1997 = vcmp.eq.f32.partialorder %v1965, 0.0
  %vm1998 = vcmp.eq.f32.partialorder %v1966, 0.0
  %vm1999 = vcmp.eq.f32.partialorder %v1967, 0.0
  %vm2000 = vcmp.eq.f32.partialorder %v1968, 0.0
  %vm2001 = vcmp.eq.f32.partialorder %v1969, 0.0
  %vm2002 = vcmp.eq.f32.partialorder %v1970, 0.0
  %vm2003 = vcmp.eq.f32.partialorder %v1971, 0.0
  %vm2004 = vcmp.eq.f32.partialorder %v1972, 0.0
  %vm2005 = vcmp.eq.f32.partialorder %v1973, 0.0
  %vm2006 = vcmp.eq.f32.partialorder %v1974, 0.0
  %vm2007 = vcmp.eq.f32.partialorder %v1975, 0.0
  %vm2008 = vcmp.eq.f32.partialorder %v1976, 0.0
  %vm2009 = vcmp.eq.f32.partialorder %v1977, 0.0
  %vm2010 = vcmp.eq.f32.partialorder %v1978, 0.0
  %vm2011 = vcmp.eq.f32.partialorder %v1979, 0.0
  %vm2012 = vcmp.eq.f32.partialorder %v1980, 0.0
  %v2013 = vsel %vm1981, -0.009, %v1949
  %v2014 = vsel %vm1982, -0.009, %v1950
  %v2015 = vsel %vm1983, -0.009, %v1951
  %v2016 = vsel %vm1984, -0.009, %v1952
  %v2017 = vsel %vm1985, -0.009, %v1953
  %v2018 = vsel %vm1986, -0.009, %v1954
  %v2019 = vsel %vm1987, -0.009, %v1955
  %v2020 = vsel %vm1988, -0.009, %v1956
  %v2021 = vsel %vm1989, -0.009, %v1957
  %v2022 = vsel %vm1990, -0.009, %v1958
  %v2023 = vsel %vm1991, -0.009, %v1959
  %v2024 = vsel %vm1992, -0.009, %v1960
  %v2025 = vsel %vm1993, -0.009, %v1961
  %v2026 = vsel %vm1994, -0.009, %v1962
  %v2027 = vsel %vm1995, -0.009, %v1963
  %v2028 = vsel %vm1996, -0.009, %v1964
  %v2029 = vsel %vm1997, -0.009, %v1965
  %v2030 = vsel %vm1998, -0.009, %v1966
  %v2031 = vsel %vm1999, -0.009, %v1967
  %v2032 = vsel %vm2000, -0.009, %v1968
  %v2033 = vsel %vm2001, -0.009, %v1969
  %v2034 = vsel %vm2002, -0.009, %v1970
  %v2035 = vsel %vm2003, -0.009, %v1971
  %v2036 = vsel %vm2004, -0.009, %v1972
  %v2037 = vsel %vm2005, -0.009, %v1973
  %v2038 = vsel %vm2006, -0.009, %v1974
  %v2039 = vsel %vm2007, -0.009, %v1975
  %v2040 = vsel %vm2008, -0.009, %v1976
  %v2041 = vsel %vm2009, -0.009, %v1977
  %v2042 = vsel %vm2010, -0.009, %v1978
  %v2043 = vsel %vm2011, -0.009, %v1979
  %v2044 = vsel %vm2012, -0.009, %v1980
  %v2045 = vxor.u32 %v2013, 2147483648
  %v2046 = vxor.u32 %v2014, 2147483648
  %v2047 = vxor.u32 %v2015, 2147483648
  %v2048 = vxor.u32 %v2016, 2147483648
  %v2049 = vxor.u32 %v2017, 2147483648
  %v2050 = vxor.u32 %v2018, 2147483648
  %v2051 = vxor.u32 %v2019, 2147483648
  %v2052 = vxor.u32 %v2020, 2147483648
  %v2053 = vxor.u32 %v2021, 2147483648
  %v2054 = vxor.u32 %v2022, 2147483648
  %v2055 = vxor.u32 %v2023, 2147483648
  %v2056 = vxor.u32 %v2024, 2147483648
  %v2057 = vxor.u32 %v2025, 2147483648
  %v2058 = vxor.u32 %v2026, 2147483648
  %v2059 = vxor.u32 %v2027, 2147483648
  %v2060 = vxor.u32 %v2028, 2147483648
  %v2061 = vxor.u32 %v2029, 2147483648
  %v2062 = vxor.u32 %v2030, 2147483648
  %v2063 = vxor.u32 %v2031, 2147483648
  %v2064 = vxor.u32 %v2032, 2147483648
  %v2065 = vxor.u32 %v2033, 2147483648
  %v2066 = vxor.u32 %v2034, 2147483648
  %v2067 = vxor.u32 %v2035, 2147483648
  %v2068 = vxor.u32 %v2036, 2147483648
  %v2069 = vxor.u32 %v2037, 2147483648
  %v2070 = vxor.u32 %v2038, 2147483648
  %v2071 = vxor.u32 %v2039, 2147483648
  %v2072 = vxor.u32 %v2040, 2147483648
  %v2073 = vxor.u32 %v2041, 2147483648
  %v2074 = vxor.u32 %v2042, 2147483648
  %v2075 = vxor.u32 %v2043, 2147483648
  %v2076 = vxor.u32 %v2044, 2147483648
  %v2077 = vmul.f32 %v2045, 1.442695
  %v2078 = vpow.pop %v2077
  %v2079 = vmul.f32 %v2046, 1.442695
  %v2080 = vpow.pop %v2079
  %v2081 = vmul.f32 %v2047, 1.442695
  %v2082 = vpow.pop %v2081
  %v2083 = vmul.f32 %v2048, 1.442695
  %v2084 = vpow.pop %v2083
  %v2085 = vmul.f32 %v2049, 1.442695
  %v2086 = vpow.pop %v2085
  %v2087 = vmul.f32 %v2050, 1.442695
  %v2088 = vpow.pop %v2087
  %v2089 = vmul.f32 %v2051, 1.442695
  %v2090 = vpow.pop %v2089
  %v2091 = vmul.f32 %v2052, 1.442695
  %v2092 = vpow.pop %v2091
  %v2093 = vmul.f32 %v2053, 1.442695
  %v2094 = vpow.pop %v2093
  %v2095 = vmul.f32 %v2054, 1.442695
  %v2096 = vpow.pop %v2095
  %v2097 = vmul.f32 %v2055, 1.442695
  %v2098 = vpow.pop %v2097
  %v2099 = vmul.f32 %v2056, 1.442695
  %v2100 = vpow.pop %v2099
  %v2101 = vmul.f32 %v2057, 1.442695
  %v2102 = vpow.pop %v2101
  %v2103 = vmul.f32 %v2058, 1.442695
  %v2104 = vpow.pop %v2103
  %v2105 = vmul.f32 %v2059, 1.442695
  %v2106 = vpow.pop %v2105
  %v2107 = vmul.f32 %v2060, 1.442695
  %v2108 = vpow.pop %v2107
  %v2109 = vmul.f32 %v2061, 1.442695
  %v2110 = vpow.pop %v2109
  %v2111 = vmul.f32 %v2062, 1.442695
  %v2112 = vpow.pop %v2111
  %v2113 = vmul.f32 %v2063, 1.442695
  %v2114 = vpow.pop %v2113
  %v2115 = vmul.f32 %v2064, 1.442695
  %v2116 = vpow.pop %v2115
  %v2117 = vmul.f32 %v2065, 1.442695
  %v2118 = vpow.pop %v2117
  %v2119 = vmul.f32 %v2066, 1.442695
  %v2120 = vpow.pop %v2119
  %v2121 = vmul.f32 %v2067, 1.442695
  %v2122 = vpow.pop %v2121
  %v2123 = vmul.f32 %v2068, 1.442695
  %v2124 = vpow.pop %v2123
  %v2125 = vmul.f32 %v2069, 1.442695
  %v2126 = vpow.pop %v2125
  %v2127 = vmul.f32 %v2070, 1.442695
  %v2128 = vpow.pop %v2127
  %v2129 = vmul.f32 %v2071, 1.442695
  %v2130 = vpow.pop %v2129
  %v2131 = vmul.f32 %v2072, 1.442695
  %v2132 = vpow.pop %v2131
  %v2133 = vmul.f32 %v2073, 1.442695
  %v2134 = vpow.pop %v2133
  %v2135 = vmul.f32 %v2074, 1.442695
  %v2136 = vpow.pop %v2135
  %v2137 = vmul.f32 %v2075, 1.442695
  %v2138 = vpow.pop %v2137
  %v2139 = vmul.f32 %v2076, 1.442695
  %v2140 = vpow.pop %v2139
  %v2141 = vadd.f32 %v2078, 1.0
  %v2142 = vadd.f32 %v2080, 1.0
  %v2143 = vadd.f32 %v2082, 1.0
  %v2144 = vadd.f32 %v2084, 1.0
  %v2145 = vadd.f32 %v2086, 1.0
  %v2146 = vadd.f32 %v2088, 1.0
  %v2147 = vadd.f32 %v2090, 1.0
  %v2148 = vadd.f32 %v2092, 1.0
  %v2149 = vadd.f32 %v2094, 1.0
  %v2150 = vadd.f32 %v2096, 1.0
  %v2151 = vadd.f32 %v2098, 1.0
  %v2152 = vadd.f32 %v2100, 1.0
  %v2153 = vadd.f32 %v2102, 1.0
  %v2154 = vadd.f32 %v2104, 1.0
  %v2155 = vadd.f32 %v2106, 1.0
  %v2156 = vadd.f32 %v2108, 1.0
  %v2157 = vadd.f32 %v2110, 1.0
  %v2158 = vadd.f32 %v2112, 1.0
  %v2159 = vadd.f32 %v2114, 1.0
  %v2160 = vadd.f32 %v2116, 1.0
  %v2161 = vadd.f32 %v2118, 1.0
  %v2162 = vadd.f32 %v2120, 1.0
  %v2163 = vadd.f32 %v2122, 1.0
  %v2164 = vadd.f32 %v2124, 1.0
  %v2165 = vadd.f32 %v2126, 1.0
  %v2166 = vadd.f32 %v2128, 1.0
  %v2167 = vadd.f32 %v2130, 1.0
  %v2168 = vadd.f32 %v2132, 1.0
  %v2169 = vadd.f32 %v2134, 1.0
  %v2170 = vadd.f32 %v2136, 1.0
  %v2171 = vadd.f32 %v2138, 1.0
  %v2172 = vadd.f32 %v2140, 1.0
  %v2173 = vrcp.pop %v2141
  %v2174 = vmul.f32 %v2141, %v2173
  %v2175 = vsub.f32 1.0, %v2174
  %v2176 = vmul.f32 %v2173, %v2175
  %v2177 = vadd.f32 %v2173, %v2176
  %vm2178 = vweird.f32 %v2141
  %vm2179 = vweird.f32 %v2173
  %vm2180 = vmor %vm2178, %vm2179
  %v2181 = vsel %vm2180, %v2173, %v2177
  %v2182 = vand.u32 2147483647, %v2141
  %vm2183 = vcmp.eq.f32.partialorder %v2182, 8.507059e+37
  %v2184 = vand.u32 %v2141, 2147483648
  %v2185 = vor.u32 1.1754944e-38, %v2184
  %v2186 = vsel %vm2183, %v2185, %v2181
  %v2187 = vmul.f32 1.0, %v2186
  %v2188 = vrcp.pop %v2142
  %v2189 = vmul.f32 %v2142, %v2188
  %v2190 = vsub.f32 1.0, %v2189
  %v2191 = vmul.f32 %v2188, %v2190
  %v2192 = vadd.f32 %v2188, %v2191
  %vm2193 = vweird.f32 %v2142
  %vm2194 = vweird.f32 %v2188
  %vm2195 = vmor %vm2193, %vm2194
  %v2196 = vsel %vm2195, %v2188, %v2192
  %v2197 = vand.u32 2147483647, %v2142
  %vm2198 = vcmp.eq.f32.partialorder %v2197, 8.507059e+37
  %v2199 = vand.u32 %v2142, 2147483648
  %v2200 = vor.u32 1.1754944e-38, %v2199
  %v2201 = vsel %vm2198, %v2200, %v2196
  %v2202 = vmul.f32 1.0, %v2201
  %v2203 = vrcp.pop %v2143
  %v2204 = vmul.f32 %v2143, %v2203
  %v2205 = vsub.f32 1.0, %v2204
  %v2206 = vmul.f32 %v2203, %v2205
  %v2207 = vadd.f32 %v2203, %v2206
  %vm2208 = vweird.f32 %v2143
  %vm2209 = vweird.f32 %v2203
  %vm2210 = vmor %vm2208, %vm2209
  %v2211 = vsel %vm2210, %v2203, %v2207
  %v2212 = vand.u32 2147483647, %v2143
  %vm2213 = vcmp.eq.f32.partialorder %v2212, 8.507059e+37
  %v2214 = vand.u32 %v2143, 2147483648
  %v2215 = vor.u32 1.1754944e-38, %v2214
  %v2216 = vsel %vm2213, %v2215, %v2211
  %v2217 = vmul.f32 1.0, %v2216
  %v2218 = vrcp.pop %v2144
  %v2219 = vmul.f32 %v2144, %v2218
  %v2220 = vsub.f32 1.0, %v2219
  %v2221 = vmul.f32 %v2218, %v2220
  %v2222 = vadd.f32 %v2218, %v2221
  %vm2223 = vweird.f32 %v2144
  %vm2224 = vweird.f32 %v2218
  %vm2225 = vmor %vm2223, %vm2224
  %v2226 = vsel %vm2225, %v2218, %v2222
  %v2227 = vand.u32 2147483647, %v2144
  %vm2228 = vcmp.eq.f32.partialorder %v2227, 8.507059e+37
  %v2229 = vand.u32 %v2144, 2147483648
  %v2230 = vor.u32 1.1754944e-38, %v2229
  %v2231 = vsel %vm2228, %v2230, %v2226
  %v2232 = vmul.f32 1.0, %v2231
  %v2233 = vrcp.pop %v2145
  %v2234 = vmul.f32 %v2145, %v2233
  %v2235 = vsub.f32 1.0, %v2234
  %v2236 = vmul.f32 %v2233, %v2235
  %v2237 = vadd.f32 %v2233, %v2236
  %vm2238 = vweird.f32 %v2145
  %vm2239 = vweird.f32 %v2233
  %vm2240 = vmor %vm2238, %vm2239
  %v2241 = vsel %vm2240, %v2233, %v2237
  %v2242 = vand.u32 2147483647, %v2145
  %vm2243 = vcmp.eq.f32.partialorder %v2242, 8.507059e+37
  %v2244 = vand.u32 %v2145, 2147483648
  %v2245 = vor.u32 1.1754944e-38, %v2244
  %v2246 = vsel %vm2243, %v2245, %v2241
  %v2247 = vmul.f32 1.0, %v2246
  %v2248 = vrcp.pop %v2146
  %v2249 = vmul.f32 %v2146, %v2248
  %v2250 = vsub.f32 1.0, %v2249
  %v2251 = vmul.f32 %v2248, %v2250
  %v2252 = vadd.f32 %v2248, %v2251
  %vm2253 = vweird.f32 %v2146
  %vm2254 = vweird.f32 %v2248
  %vm2255 = vmor %vm2253, %vm2254
  %v2256 = vsel %vm2255, %v2248, %v2252
  %v2257 = vand.u32 2147483647, %v2146
  %vm2258 = vcmp.eq.f32.partialorder %v2257, 8.507059e+37
  %v2259 = vand.u32 %v2146, 2147483648
  %v2260 = vor.u32 1.1754944e-38, %v2259
  %v2261 = vsel %vm2258, %v2260, %v2256
  %v2262 = vmul.f32 1.0, %v2261
  %v2263 = vrcp.pop %v2147
  %v2264 = vmul.f32 %v2147, %v2263
  %v2265 = vsub.f32 1.0, %v2264
  %v2266 = vmul.f32 %v2263, %v2265
  %v2267 = vadd.f32 %v2263, %v2266
  %vm2268 = vweird.f32 %v2147
  %vm2269 = vweird.f32 %v2263
  %vm2270 = vmor %vm2268, %vm2269
  %v2271 = vsel %vm2270, %v2263, %v2267
  %v2272 = vand.u32 2147483647, %v2147
  %vm2273 = vcmp.eq.f32.partialorder %v2272, 8.507059e+37
  %v2274 = vand.u32 %v2147, 2147483648
  %v2275 = vor.u32 1.1754944e-38, %v2274
  %v2276 = vsel %vm2273, %v2275, %v2271
  %v2277 = vmul.f32 1.0, %v2276
  %v2278 = vrcp.pop %v2148
  %v2279 = vmul.f32 %v2148, %v2278
  %v2280 = vsub.f32 1.0, %v2279
  %v2281 = vmul.f32 %v2278, %v2280
  %v2282 = vadd.f32 %v2278, %v2281
  %vm2283 = vweird.f32 %v2148
  %vm2284 = vweird.f32 %v2278
  %vm2285 = vmor %vm2283, %vm2284
  %v2286 = vsel %vm2285, %v2278, %v2282
  %v2287 = vand.u32 2147483647, %v2148
  %vm2288 = vcmp.eq.f32.partialorder %v2287, 8.507059e+37
  %v2289 = vand.u32 %v2148, 2147483648
  %v2290 = vor.u32 1.1754944e-38, %v2289
  %v2291 = vsel %vm2288, %v2290, %v2286
  %v2292 = vmul.f32 1.0, %v2291
  %v2293 = vrcp.pop %v2149
  %v2294 = vmul.f32 %v2149, %v2293
  %v2295 = vsub.f32 1.0, %v2294
  %v2296 = vmul.f32 %v2293, %v2295
  %v2297 = vadd.f32 %v2293, %v2296
  %vm2298 = vweird.f32 %v2149
  %vm2299 = vweird.f32 %v2293
  %vm2300 = vmor %vm2298, %vm2299
  %v2301 = vsel %vm2300, %v2293, %v2297
  %v2302 = vand.u32 2147483647, %v2149
  %vm2303 = vcmp.eq.f32.partialorder %v2302, 8.507059e+37
  %v2304 = vand.u32 %v2149, 2147483648
  %v2305 = vor.u32 1.1754944e-38, %v2304
  %v2306 = vsel %vm2303, %v2305, %v2301
  %v2307 = vmul.f32 1.0, %v2306
  %v2308 = vrcp.pop %v2150
  %v2309 = vmul.f32 %v2150, %v2308
  %v2310 = vsub.f32 1.0, %v2309
  %v2311 = vmul.f32 %v2308, %v2310
  %v2312 = vadd.f32 %v2308, %v2311
  %vm2313 = vweird.f32 %v2150
  %vm2314 = vweird.f32 %v2308
  %vm2315 = vmor %vm2313, %vm2314
  %v2316 = vsel %vm2315, %v2308, %v2312
  %v2317 = vand.u32 2147483647, %v2150
  %vm2318 = vcmp.eq.f32.partialorder %v2317, 8.507059e+37
  %v2319 = vand.u32 %v2150, 2147483648
  %v2320 = vor.u32 1.1754944e-38, %v2319
  %v2321 = vsel %vm2318, %v2320, %v2316
  %v2322 = vmul.f32 1.0, %v2321
  %v2323 = vrcp.pop %v2151
  %v2324 = vmul.f32 %v2151, %v2323
  %v2325 = vsub.f32 1.0, %v2324
  %v2326 = vmul.f32 %v2323, %v2325
  %v2327 = vadd.f32 %v2323, %v2326
  %vm2328 = vweird.f32 %v2151
  %vm2329 = vweird.f32 %v2323
  %vm2330 = vmor %vm2328, %vm2329
  %v2331 = vsel %vm2330, %v2323, %v2327
  %v2332 = vand.u32 2147483647, %v2151
  %vm2333 = vcmp.eq.f32.partialorder %v2332, 8.507059e+37
  %v2334 = vand.u32 %v2151, 2147483648
  %v2335 = vor.u32 1.1754944e-38, %v2334
  %v2336 = vsel %vm2333, %v2335, %v2331
  %v2337 = vmul.f32 1.0, %v2336
  %v2338 = vrcp.pop %v2152
  %v2339 = vmul.f32 %v2152, %v2338
  %v2340 = vsub.f32 1.0, %v2339
  %v2341 = vmul.f32 %v2338, %v2340
  %v2342 = vadd.f32 %v2338, %v2341
  %vm2343 = vweird.f32 %v2152
  %vm2344 = vweird.f32 %v2338
  %vm2345 = vmor %vm2343, %vm2344
  %v2346 = vsel %vm2345, %v2338, %v2342
  %v2347 = vand.u32 2147483647, %v2152
  %vm2348 = vcmp.eq.f32.partialorder %v2347, 8.507059e+37
  %v2349 = vand.u32 %v2152, 2147483648
  %v2350 = vor.u32 1.1754944e-38, %v2349
  %v2351 = vsel %vm2348, %v2350, %v2346
  %v2352 = vmul.f32 1.0, %v2351
  %v2353 = vrcp.pop %v2153
  %v2354 = vmul.f32 %v2153, %v2353
  %v2355 = vsub.f32 1.0, %v2354
  %v2356 = vmul.f32 %v2353, %v2355
  %v2357 = vadd.f32 %v2353, %v2356
  %vm2358 = vweird.f32 %v2153
  %vm2359 = vweird.f32 %v2353
  %vm2360 = vmor %vm2358, %vm2359
  %v2361 = vsel %vm2360, %v2353, %v2357
  %v2362 = vand.u32 2147483647, %v2153
  %vm2363 = vcmp.eq.f32.partialorder %v2362, 8.507059e+37
  %v2364 = vand.u32 %v2153, 2147483648
  %v2365 = vor.u32 1.1754944e-38, %v2364
  %v2366 = vsel %vm2363, %v2365, %v2361
  %v2367 = vmul.f32 1.0, %v2366
  %v2368 = vrcp.pop %v2154
  %v2369 = vmul.f32 %v2154, %v2368
  %v2370 = vsub.f32 1.0, %v2369
  %v2371 = vmul.f32 %v2368, %v2370
  %v2372 = vadd.f32 %v2368, %v2371
  %vm2373 = vweird.f32 %v2154
  %vm2374 = vweird.f32 %v2368
  %vm2375 = vmor %vm2373, %vm2374
  %v2376 = vsel %vm2375, %v2368, %v2372
  %v2377 = vand.u32 2147483647, %v2154
  %vm2378 = vcmp.eq.f32.partialorder %v2377, 8.507059e+37
  %v2379 = vand.u32 %v2154, 2147483648
  %v2380 = vor.u32 1.1754944e-38, %v2379
  %v2381 = vsel %vm2378, %v2380, %v2376
  %v2382 = vmul.f32 1.0, %v2381
  %v2383 = vrcp.pop %v2155
  %v2384 = vmul.f32 %v2155, %v2383
  %v2385 = vsub.f32 1.0, %v2384
  %v2386 = vmul.f32 %v2383, %v2385
  %v2387 = vadd.f32 %v2383, %v2386
  %vm2388 = vweird.f32 %v2155
  %vm2389 = vweird.f32 %v2383
  %vm2390 = vmor %vm2388, %vm2389
  %v2391 = vsel %vm2390, %v2383, %v2387
  %v2392 = vand.u32 2147483647, %v2155
  %vm2393 = vcmp.eq.f32.partialorder %v2392, 8.507059e+37
  %v2394 = vand.u32 %v2155, 2147483648
  %v2395 = vor.u32 1.1754944e-38, %v2394
  %v2396 = vsel %vm2393, %v2395, %v2391
  %v2397 = vmul.f32 1.0, %v2396
  %v2398 = vrcp.pop %v2156
  %v2399 = vmul.f32 %v2156, %v2398
  %v2400 = vsub.f32 1.0, %v2399
  %v2401 = vmul.f32 %v2398, %v2400
  %v2402 = vadd.f32 %v2398, %v2401
  %vm2403 = vweird.f32 %v2156
  %vm2404 = vweird.f32 %v2398
  %vm2405 = vmor %vm2403, %vm2404
  %v2406 = vsel %vm2405, %v2398, %v2402
  %v2407 = vand.u32 2147483647, %v2156
  %vm2408 = vcmp.eq.f32.partialorder %v2407, 8.507059e+37
  %v2409 = vand.u32 %v2156, 2147483648
  %v2410 = vor.u32 1.1754944e-38, %v2409
  %v2411 = vsel %vm2408, %v2410, %v2406
  %v2412 = vmul.f32 1.0, %v2411
  %v2413 = vrcp.pop %v2157
  %v2414 = vmul.f32 %v2157, %v2413
  %v2415 = vsub.f32 1.0, %v2414
  %v2416 = vmul.f32 %v2413, %v2415
  %v2417 = vadd.f32 %v2413, %v2416
  %vm2418 = vweird.f32 %v2157
  %vm2419 = vweird.f32 %v2413
  %vm2420 = vmor %vm2418, %vm2419
  %v2421 = vsel %vm2420, %v2413, %v2417
  %v2422 = vand.u32 2147483647, %v2157
  %vm2423 = vcmp.eq.f32.partialorder %v2422, 8.507059e+37
  %v2424 = vand.u32 %v2157, 2147483648
  %v2425 = vor.u32 1.1754944e-38, %v2424
  %v2426 = vsel %vm2423, %v2425, %v2421
  %v2427 = vmul.f32 1.0, %v2426
  %v2428 = vrcp.pop %v2158
  %v2429 = vmul.f32 %v2158, %v2428
  %v2430 = vsub.f32 1.0, %v2429
  %v2431 = vmul.f32 %v2428, %v2430
  %v2432 = vadd.f32 %v2428, %v2431
  %vm2433 = vweird.f32 %v2158
  %vm2434 = vweird.f32 %v2428
  %vm2435 = vmor %vm2433, %vm2434
  %v2436 = vsel %vm2435, %v2428, %v2432
  %v2437 = vand.u32 2147483647, %v2158
  %vm2438 = vcmp.eq.f32.partialorder %v2437, 8.507059e+37
  %v2439 = vand.u32 %v2158, 2147483648
  %v2440 = vor.u32 1.1754944e-38, %v2439
  %v2441 = vsel %vm2438, %v2440, %v2436
  %v2442 = vmul.f32 1.0, %v2441
  %v2443 = vrcp.pop %v2159
  %v2444 = vmul.f32 %v2159, %v2443
  %v2445 = vsub.f32 1.0, %v2444
  %v2446 = vmul.f32 %v2443, %v2445
  %v2447 = vadd.f32 %v2443, %v2446
  %vm2448 = vweird.f32 %v2159
  %vm2449 = vweird.f32 %v2443
  %vm2450 = vmor %vm2448, %vm2449
  %v2451 = vsel %vm2450, %v2443, %v2447
  %v2452 = vand.u32 2147483647, %v2159
  %vm2453 = vcmp.eq.f32.partialorder %v2452, 8.507059e+37
  %v2454 = vand.u32 %v2159, 2147483648
  %v2455 = vor.u32 1.1754944e-38, %v2454
  %v2456 = vsel %vm2453, %v2455, %v2451
  %v2457 = vmul.f32 1.0, %v2456
  %v2458 = vrcp.pop %v2160
  %v2459 = vmul.f32 %v2160, %v2458
  %v2460 = vsub.f32 1.0, %v2459
  %v2461 = vmul.f32 %v2458, %v2460
  %v2462 = vadd.f32 %v2458, %v2461
  %vm2463 = vweird.f32 %v2160
  %vm2464 = vweird.f32 %v2458
  %vm2465 = vmor %vm2463, %vm2464
  %v2466 = vsel %vm2465, %v2458, %v2462
  %v2467 = vand.u32 2147483647, %v2160
  %vm2468 = vcmp.eq.f32.partialorder %v2467, 8.507059e+37
  %v2469 = vand.u32 %v2160, 2147483648
  %v2470 = vor.u32 1.1754944e-38, %v2469
  %v2471 = vsel %vm2468, %v2470, %v2466
  %v2472 = vmul.f32 1.0, %v2471
  %v2473 = vrcp.pop %v2161
  %v2474 = vmul.f32 %v2161, %v2473
  %v2475 = vsub.f32 1.0, %v2474
  %v2476 = vmul.f32 %v2473, %v2475
  %v2477 = vadd.f32 %v2473, %v2476
  %vm2478 = vweird.f32 %v2161
  %vm2479 = vweird.f32 %v2473
  %vm2480 = vmor %vm2478, %vm2479
  %v2481 = vsel %vm2480, %v2473, %v2477
  %v2482 = vand.u32 2147483647, %v2161
  %vm2483 = vcmp.eq.f32.partialorder %v2482, 8.507059e+37
  %v2484 = vand.u32 %v2161, 2147483648
  %v2485 = vor.u32 1.1754944e-38, %v2484
  %v2486 = vsel %vm2483, %v2485, %v2481
  %v2487 = vmul.f32 1.0, %v2486
  %v2488 = vrcp.pop %v2162
  %v2489 = vmul.f32 %v2162, %v2488
  %v2490 = vsub.f32 1.0, %v2489
  %v2491 = vmul.f32 %v2488, %v2490
  %v2492 = vadd.f32 %v2488, %v2491
  %vm2493 = vweird.f32 %v2162
  %vm2494 = vweird.f32 %v2488
  %vm2495 = vmor %vm2493, %vm2494
  %v2496 = vsel %vm2495, %v2488, %v2492
  %v2497 = vand.u32 2147483647, %v2162
  %vm2498 = vcmp.eq.f32.partialorder %v2497, 8.507059e+37
  %v2499 = vand.u32 %v2162, 2147483648
  %v2500 = vor.u32 1.1754944e-38, %v2499
  %v2501 = vsel %vm2498, %v2500, %v2496
  %v2502 = vmul.f32 1.0, %v2501
  %v2503 = vrcp.pop %v2163
  %v2504 = vmul.f32 %v2163, %v2503
  %v2505 = vsub.f32 1.0, %v2504
  %v2506 = vmul.f32 %v2503, %v2505
  %v2507 = vadd.f32 %v2503, %v2506
  %vm2508 = vweird.f32 %v2163
  %vm2509 = vweird.f32 %v2503
  %vm2510 = vmor %vm2508, %vm2509
  %v2511 = vsel %vm2510, %v2503, %v2507
  %v2512 = vand.u32 2147483647, %v2163
  %vm2513 = vcmp.eq.f32.partialorder %v2512, 8.507059e+37
  %v2514 = vand.u32 %v2163, 2147483648
  %v2515 = vor.u32 1.1754944e-38, %v2514
  %v2516 = vsel %vm2513, %v2515, %v2511
  %v2517 = vmul.f32 1.0, %v2516
  %v2518 = vrcp.pop %v2164
  %v2519 = vmul.f32 %v2164, %v2518
  %v2520 = vsub.f32 1.0, %v2519
  %v2521 = vmul.f32 %v2518, %v2520
  %v2522 = vadd.f32 %v2518, %v2521
  %vm2523 = vweird.f32 %v2164
  %vm2524 = vweird.f32 %v2518
  %vm2525 = vmor %vm2523, %vm2524
  %v2526 = vsel %vm2525, %v2518, %v2522
  %v2527 = vand.u32 2147483647, %v2164
  %vm2528 = vcmp.eq.f32.partialorder %v2527, 8.507059e+37
  %v2529 = vand.u32 %v2164, 2147483648
  %v2530 = vor.u32 1.1754944e-38, %v2529
  %v2531 = vsel %vm2528, %v2530, %v2526
  %v2532 = vmul.f32 1.0, %v2531
  %v2533 = vrcp.pop %v2165
  %v2534 = vmul.f32 %v2165, %v2533
  %v2535 = vsub.f32 1.0, %v2534
  %v2536 = vmul.f32 %v2533, %v2535
  %v2537 = vadd.f32 %v2533, %v2536
  %vm2538 = vweird.f32 %v2165
  %vm2539 = vweird.f32 %v2533
  %vm2540 = vmor %vm2538, %vm2539
  %v2541 = vsel %vm2540, %v2533, %v2537
  %v2542 = vand.u32 2147483647, %v2165
  %vm2543 = vcmp.eq.f32.partialorder %v2542, 8.507059e+37
  %v2544 = vand.u32 %v2165, 2147483648
  %v2545 = vor.u32 1.1754944e-38, %v2544
  %v2546 = vsel %vm2543, %v2545, %v2541
  %v2547 = vmul.f32 1.0, %v2546
  %v2548 = vrcp.pop %v2166
  %v2549 = vmul.f32 %v2166, %v2548
  %v2550 = vsub.f32 1.0, %v2549
  %v2551 = vmul.f32 %v2548, %v2550
  %v2552 = vadd.f32 %v2548, %v2551
  %vm2553 = vweird.f32 %v2166
  %vm2554 = vweird.f32 %v2548
  %vm2555 = vmor %vm2553, %vm2554
  %v2556 = vsel %vm2555, %v2548, %v2552
  %v2557 = vand.u32 2147483647, %v2166
  %vm2558 = vcmp.eq.f32.partialorder %v2557, 8.507059e+37
  %v2559 = vand.u32 %v2166, 2147483648
  %v2560 = vor.u32 1.1754944e-38, %v2559
  %v2561 = vsel %vm2558, %v2560, %v2556
  %v2562 = vmul.f32 1.0, %v2561
  %v2563 = vrcp.pop %v2167
  %v2564 = vmul.f32 %v2167, %v2563
  %v2565 = vsub.f32 1.0, %v2564
  %v2566 = vmul.f32 %v2563, %v2565
  %v2567 = vadd.f32 %v2563, %v2566
  %vm2568 = vweird.f32 %v2167
  %vm2569 = vweird.f32 %v2563
  %vm2570 = vmor %vm2568, %vm2569
  %v2571 = vsel %vm2570, %v2563, %v2567
  %v2572 = vand.u32 2147483647, %v2167
  %vm2573 = vcmp.eq.f32.partialorder %v2572, 8.507059e+37
  %v2574 = vand.u32 %v2167, 2147483648
  %v2575 = vor.u32 1.1754944e-38, %v2574
  %v2576 = vsel %vm2573, %v2575, %v2571
  %v2577 = vmul.f32 1.0, %v2576
  %v2578 = vrcp.pop %v2168
  %v2579 = vmul.f32 %v2168, %v2578
  %v2580 = vsub.f32 1.0, %v2579
  %v2581 = vmul.f32 %v2578, %v2580
  %v2582 = vadd.f32 %v2578, %v2581
  %vm2583 = vweird.f32 %v2168
  %vm2584 = vweird.f32 %v2578
  %vm2585 = vmor %vm2583, %vm2584
  %v2586 = vsel %vm2585, %v2578, %v2582
  %v2587 = vand.u32 2147483647, %v2168
  %vm2588 = vcmp.eq.f32.partialorder %v2587, 8.507059e+37
  %v2589 = vand.u32 %v2168, 2147483648
  %v2590 = vor.u32 1.1754944e-38, %v2589
  %v2591 = vsel %vm2588, %v2590, %v2586
  %v2592 = vmul.f32 1.0, %v2591
  %v2593 = vrcp.pop %v2169
  %v2594 = vmul.f32 %v2169, %v2593
  %v2595 = vsub.f32 1.0, %v2594
  %v2596 = vmul.f32 %v2593, %v2595
  %v2597 = vadd.f32 %v2593, %v2596
  %vm2598 = vweird.f32 %v2169
  %vm2599 = vweird.f32 %v2593
  %vm2600 = vmor %vm2598, %vm2599
  %v2601 = vsel %vm2600, %v2593, %v2597
  %v2602 = vand.u32 2147483647, %v2169
  %vm2603 = vcmp.eq.f32.partialorder %v2602, 8.507059e+37
  %v2604 = vand.u32 %v2169, 2147483648
  %v2605 = vor.u32 1.1754944e-38, %v2604
  %v2606 = vsel %vm2603, %v2605, %v2601
  %v2607 = vmul.f32 1.0, %v2606
  %v2608 = vrcp.pop %v2170
  %v2609 = vmul.f32 %v2170, %v2608
  %v2610 = vsub.f32 1.0, %v2609
  %v2611 = vmul.f32 %v2608, %v2610
  %v2612 = vadd.f32 %v2608, %v2611
  %vm2613 = vweird.f32 %v2170
  %vm2614 = vweird.f32 %v2608
  %vm2615 = vmor %vm2613, %vm2614
  %v2616 = vsel %vm2615, %v2608, %v2612
  %v2617 = vand.u32 2147483647, %v2170
  %vm2618 = vcmp.eq.f32.partialorder %v2617, 8.507059e+37
  %v2619 = vand.u32 %v2170, 2147483648
  %v2620 = vor.u32 1.1754944e-38, %v2619
  %v2621 = vsel %vm2618, %v2620, %v2616
  %v2622 = vmul.f32 1.0, %v2621
  %v2623 = vrcp.pop %v2171
  %v2624 = vmul.f32 %v2171, %v2623
  %v2625 = vsub.f32 1.0, %v2624
  %v2626 = vmul.f32 %v2623, %v2625
  %v2627 = vadd.f32 %v2623, %v2626
  %vm2628 = vweird.f32 %v2171
  %vm2629 = vweird.f32 %v2623
  %vm2630 = vmor %vm2628, %vm2629
  %v2631 = vsel %vm2630, %v2623, %v2627
  %v2632 = vand.u32 2147483647, %v2171
  %vm2633 = vcmp.eq.f32.partialorder %v2632, 8.507059e+37
  %v2634 = vand.u32 %v2171, 2147483648
  %v2635 = vor.u32 1.1754944e-38, %v2634
  %v2636 = vsel %vm2633, %v2635, %v2631
  %v2637 = vmul.f32 1.0, %v2636
  %v2638 = vrcp.pop %v2172
  %v2639 = vmul.f32 %v2172, %v2638
  %v2640 = vsub.f32 1.0, %v2639
  %v2641 = vmul.f32 %v2638, %v2640
  %v2642 = vadd.f32 %v2638, %v2641
  %vm2643 = vweird.f32 %v2172
  %vm2644 = vweird.f32 %v2638
  %vm2645 = vmor %vm2643, %vm2644
  %v2646 = vsel %vm2645, %v2638, %v2642
  %v2647 = vand.u32 2147483647, %v2172
  %vm2648 = vcmp.eq.f32.partialorder %v2647, 8.507059e+37
  %v2649 = vand.u32 %v2172, 2147483648
  %v2650 = vor.u32 1.1754944e-38, %v2649
  %v2651 = vsel %vm2648, %v2650, %v2646
  %v2652 = vmul.f32 1.0, %v2651
  %vm2653 = vcmask 7168
  %2654 = vst.msk [vmem:[%s6] sm:$0xff] %vm2653, %v2187
  %2655 = vst.msk [vmem:[%s6 + $0x8] sm:$0xff] %vm2653, %v2202
  %2656 = vst.msk [vmem:[%s6 + $0x10] sm:$0xff] %vm2653, %v2217
  %2657 = vst.msk [vmem:[%s6 + $0x18] sm:$0xff] %vm2653, %v2232
  %2658 = vst.msk [vmem:[%s6 + $0x20] sm:$0xff] %vm2653, %v2247
  %2659 = vst.msk [vmem:[%s6 + $0x28] sm:$0xff] %vm2653, %v2262
  %2660 = vst.msk [vmem:[%s6 + $0x30] sm:$0xff] %vm2653, %v2277
  %2661 = vst.msk [vmem:[%s6 + $0x38] sm:$0xff] %vm2653, %v2292
  %2662 = vst.msk [vmem:[%s6 + $0x40] sm:$0xff] %vm2653, %v2307
  %2663 = vst.msk [vmem:[%s6 + $0x48] sm:$0xff] %vm2653, %v2322
  %2664 = vst.msk [vmem:[%s6 + $0x50] sm:$0xff] %vm2653, %v2337
  %2665 = vst.msk [vmem:[%s6 + $0x58] sm:$0xff] %vm2653, %v2352
  %2666 = vst.msk [vmem:[%s6 + $0x60] sm:$0xff] %vm2653, %v2367
  %2667 = vst.msk [vmem:[%s6 + $0x68] sm:$0xff] %vm2653, %v2382
  %2668 = vst.msk [vmem:[%s6 + $0x70] sm:$0xff] %vm2653, %v2397
  %2669 = vst.msk [vmem:[%s6 + $0x78] sm:$0xff] %vm2653, %v2412
  %2670 = vst.msk [vmem:[%s6 + $0x80] sm:$0xff] %vm2653, %v2427
  %2671 = vst.msk [vmem:[%s6 + $0x88] sm:$0xff] %vm2653, %v2442
  %2672 = vst.msk [vmem:[%s6 + $0x90] sm:$0xff] %vm2653, %v2457
  %2673 = vst.msk [vmem:[%s6 + $0x98] sm:$0xff] %vm2653, %v2472
  %2674 = vst.msk [vmem:[%s6 + $0xa0] sm:$0xff] %vm2653, %v2487
  %2675 = vst.msk [vmem:[%s6 + $0xa8] sm:$0xff] %vm2653, %v2502
  %2676 = vst.msk [vmem:[%s6 + $0xb0] sm:$0xff] %vm2653, %v2517
  %2677 = vst.msk [vmem:[%s6 + $0xb8] sm:$0xff] %vm2653, %v2532
  %2678 = vst.msk [vmem:[%s6 + $0xc0] sm:$0xff] %vm2653, %v2547
  %2679 = vst.msk [vmem:[%s6 + $0xc8] sm:$0xff] %vm2653, %v2562
  %2680 = vst.msk [vmem:[%s6 + $0xd0] sm:$0xff] %vm2653, %v2577
  %2681 = vst.msk [vmem:[%s6 + $0xd8] sm:$0xff] %vm2653, %v2592
  %2682 = vst.msk [vmem:[%s6 + $0xe0] sm:$0xff] %vm2653, %v2607
  %2683 = vst.msk [vmem:[%s6 + $0xe8] sm:$0xff] %vm2653, %v2622
  %2684 = vst.msk [vmem:[%s6 + $0xf0] sm:$0xff] %vm2653, %v2637
  %2685 = vst.msk [vmem:[%s6 + $0xf8] sm:$0xff] %vm2653, %v2652
  // Predicated region
  $region26: #{exab_classifier_head.1} parent=0 // pred_check
    _
  $region27: #{exab_classifier_head.1} parent=0 // pred_check_branch
    %2687 = sbr.rel (0) target = $region29
  $region28: #{exab_classifier_head.1} parent=0 // pred_region
    _
  $region29: #{exab_classifier_head.1} parent=0 // pred_fallthru
    _
  // Predicated region
  $region30: #{exab_classifier_head.1} parent=0 // pred_check
    _
  $region31: #{exab_classifier_head.1} parent=0 // pred_check_branch
    %2689 = sbr.rel (0) target = $region33
  $region32: #{exab_classifier_head.1} parent=0 // pred_region
    _
  $region33: #{exab_classifier_head.1} parent=0 // pred_fallthru
    _

</llo_original>
